<compile_context>
chip_gen: v6e
topology: v6e:2x2x1
jax: 0.10.0
libtpu: 0.0.40
codegen_flags: <defaults>
</compile_context>

<pallas_src>
import jax
import jax.numpy as jnp
from jax.experimental import pallas as pl
from jax.experimental.pallas import tpu as pltpu

IN_DIM = 400
HID_DIM = 400
OUT_DIM = 4410

N_PAD = 4608       # 4410 -> 36*128 (lane-dense output tiles)


def _default_tile_n():
    """2 big tiles on single-TC v5e/v6e, 4 even tiles for v7x's two TCs."""
    try:
        kind = jax.devices()[0].device_kind.lower()
    except Exception:
        return 1152
    if "v5" in kind or "v6" in kind:
        return 2304    # single TensorCore: fewer, bigger tiles
    return 1152        # 2 TCs: 4 even tiles, keeps per-core double-buffering


def decoder_kernel(x_ref, w1_ref, b1_ref, w2_ref, b2_ref, o_ref):
    # dense1 + ReLU.  Recomputed per N tile (~few MFLOP, negligible); x/W1/b1
    # have constant index_maps so they are DMA'd once and stay VMEM-resident.
    h = jnp.dot(x_ref[...], w1_ref[...], preferred_element_type=jnp.float32)
    h = jnp.maximum(h + b1_ref[...], 0.0)
    # dense3 tile + tanh (bf16 MXU inputs, f32 accumulate / epilogue).
    y = jnp.dot(h.astype(jnp.bfloat16), w2_ref[...],
                preferred_element_type=jnp.float32)
    o_ref[...] = jnp.tanh(y + b2_ref[...]).astype(o_ref.dtype)


def prepare_decoder_params(w1, b1, w2, b2):
    """One-time pad/cast of the weights to kernel layout (call ONCE, reuse)."""
    w1p = w1.astype(jnp.bfloat16)                               # (400, 400)
    b1p = b1.reshape(1, HID_DIM).astype(jnp.float32)            # (1, 400)
    w2p = jnp.zeros((HID_DIM, N_PAD), jnp.bfloat16)
    w2p = w2p.at[:, :OUT_DIM].set(w2.astype(jnp.bfloat16))      # (400, 4608)
    b2p = jnp.zeros((1, N_PAD), jnp.float32).at[0, :OUT_DIM].set(b2)
    return w1p, b1p, w2p, b2p


def variational_decoder(x, params, *, tn=None):
    """x: (B, 400) f32; params from prepare_decoder_params -> (B, 4410) f32."""
    w1p, b1p, w2p, b2p = params
    if tn is None:
        tn = _default_tile_n()
    assert N_PAD % tn == 0

    B = x.shape[0]
    B_pad = max(16, ((B + 15) // 16) * 16)   # bf16 packs 16 rows / sublane grp

    # Only the (small) activation is padded/cast per call.
    xp = jnp.zeros((B_pad, IN_DIM), jnp.bfloat16)
    xp = xp.at[:B, :].set(x.astype(jnp.bfloat16))

    bytes_accessed = (xp.size * 2 + w1p.size * 2 + b1p.size * 4
                      + w2p.size * 2 + b2p.size * 4 + B_pad * N_PAD * 4)
    flops = 2 * B_pad * (IN_DIM * HID_DIM + HID_DIM * N_PAD)

    out = pl.pallas_call(
        decoder_kernel,
        out_shape=jax.ShapeDtypeStruct((B_pad, N_PAD), jnp.float32),
        grid_spec=pltpu.PrefetchScalarGridSpec(
            num_scalar_prefetch=0,
            grid=(N_PAD // tn,),
            in_specs=[
                pl.BlockSpec((B_pad, IN_DIM), lambda n: (0, 0)),   # x: resident
                pl.BlockSpec((IN_DIM, HID_DIM), lambda n: (0, 0)), # W1: resident
                pl.BlockSpec((1, HID_DIM), lambda n: (0, 0)),      # b1: resident
                pl.BlockSpec((HID_DIM, tn), lambda n: (0, n)),     # W2: streamed
                pl.BlockSpec((1, tn), lambda n: (0, n)),           # b2: streamed
            ],
            out_specs=pl.BlockSpec((B_pad, tn), lambda n: (0, n)),
        ),
        compiler_params=pltpu.CompilerParams(
            dimension_semantics=("parallel",),   # split N across TCs on v7x
        ),
        cost_estimate=pl.CostEstimate(
            flops=int(flops),
            transcendentals=int(B_pad * N_PAD),
            bytes_accessed=int(bytes_accessed),
        ),
    )(xp, w1p, b1p, w2p, b2p)
    return out[:B, :OUT_DIM]


def init_params(key):
    """Deterministic init mimicking PyTorch nn.Linear: U(-1/sqrt(fan_in), ...)."""
    k1, k2, k3, k4 = jax.random.split(key, 4)
    bound1 = 1.0 / jnp.sqrt(IN_DIM)
    bound2 = 1.0 / jnp.sqrt(HID_DIM)
    w1 = jax.random.uniform(k1, (IN_DIM, HID_DIM), jnp.float32, -bound1, bound1)
    b1 = jax.random.uniform(k2, (HID_DIM,), jnp.float32, -bound1, bound1)
    w2 = jax.random.uniform(k3, (HID_DIM, OUT_DIM), jnp.float32, -bound2, bound2)
    b2 = jax.random.uniform(k4, (OUT_DIM,), jnp.float32, -bound2, bound2)
    return w1, b1, w2, b2


def reference_bf16(x, w1, b1, w2, b2):
    """Reference with the same bf16 quantization of MXU inputs as the kernel."""
    xb = x.astype(jnp.bfloat16)
    w1b = w1.astype(jnp.bfloat16)
    w2b = w2.astype(jnp.bfloat16)
    h = jnp.maximum(
        jnp.dot(xb, w1b, preferred_element_type=jnp.float32) + b1, 0.0)
    y = jnp.dot(h.astype(jnp.bfloat16), w2b,
                preferred_element_type=jnp.float32) + b2
    return jnp.tanh(y)


def reference_f32(x, w1, b1, w2, b2):
    h = jnp.maximum(x @ w1 + b1, 0.0)
    return jnp.tanh(h @ w2 + b2)


if __name__ == "__main__":
    key = jax.random.PRNGKey(0)
    kx, kp = jax.random.split(key)

    B = 8  # small batch
    x = jax.random.normal(kx, (B, IN_DIM), jnp.float32)
    w1, b1, w2, b2 = init_params(kp)

    # One-time weight preparation (hoisted out of the per-call path).
    params = prepare_decoder_params(w1, b1, w2, b2)
    params = jax.block_until_ready(params)

    out = variational_decoder(x, params)
    out = jax.block_until_ready(out)
    assert out.shape == (B, OUT_DIM)

    ref_q = reference_bf16(x, w1, b1, w2, b2)   # same bf16 quantization
    ref_f = reference_f32(x, w1, b1, w2, b2)    # full-precision sanity check
    assert jnp.allclose(out, ref_q, atol=2e-3, rtol=1e-3), "mismatch vs bf16 reference"
    assert jnp.max(jnp.abs(out - ref_f)) < 5e-2, "mismatch vs f32 reference"

    print("KERNEL_OK")
</pallas_src>

<mosaic_0001>
module attributes {stable_mosaic.version = 11 : i64} {
  func.func @decoder_kernel(%arg0: i32, %arg1: memref<16x400xbf16, #tpu.memory_space<vmem>>, %arg2: memref<400x400xbf16, #tpu.memory_space<vmem>>, %arg3: memref<1x400xf32, #tpu.memory_space<vmem>>, %arg4: memref<400x1152xbf16, #tpu.memory_space<vmem>>, %arg5: memref<1x1152xf32, #tpu.memory_space<vmem>>, %arg6: memref<16x1152xf32, #tpu.memory_space<vmem>>) attributes {dimension_semantics = [#tpu.dimension_semantics<parallel>], iteration_bounds = array<i64: 4>, scalar_prefetch = 0 : i64, scratch_operands = 0 : i64, tpu.core_type = #tpu.core_type<tc>, window_params = [{pipeline_mode = #tpu.pipeline_mode<synchronous>, transform_indices = @transform_0, window_bounds = array<i64: 16, 400>}, {pipeline_mode = #tpu.pipeline_mode<synchronous>, transform_indices = @transform_1, window_bounds = array<i64: 400, 400>}, {pipeline_mode = #tpu.pipeline_mode<synchronous>, transform_indices = @transform_2, window_bounds = array<i64: 1, 400>}, {transform_indices = @transform_3, window_bounds = array<i64: 400, 1152>}, {transform_indices = @transform_4, window_bounds = array<i64: 1, 1152>}, {transform_indices = @transform_5, window_bounds = array<i64: 16, 1152>}]} {
    %c0 = arith.constant 0 : index
    %c0_0 = arith.constant 0 : index
    %0 = vector.load %arg1[%c0, %c0_0] : memref<16x400xbf16, #tpu.memory_space<vmem>>, vector<16x400xbf16>
    %c0_1 = arith.constant 0 : index
    %c0_2 = arith.constant 0 : index
    %1 = vector.load %arg2[%c0_1, %c0_2] : memref<400x400xbf16, #tpu.memory_space<vmem>>, vector<400x400xbf16>
    %cst = arith.constant dense<0.000000e+00> : vector<16x400xf32>
    %2 = tpu.matmul %0, %1, %cst {dimension_numbers = #tpu.dot_dimension_numbers<[1], [0], [0], [1], [0, 0, 1, 1], [], []>} : vector<16x400xbf16>, vector<400x400xbf16>, vector<16x400xf32> -> vector<16x400xf32>
    %c0_3 = arith.constant 0 : index
    %c0_4 = arith.constant 0 : index
    %3 = vector.load %arg3[%c0_3, %c0_4] : memref<1x400xf32, #tpu.memory_space<vmem>>, vector<1x400xf32>
    %4 = vector.broadcast %3 : vector<1x400xf32> to vector<16x400xf32>
    %5 = arith.addf %2, %4 : vector<16x400xf32>
    %cst_5 = arith.constant 0.000000e+00 : f32
    %6 = vector.broadcast %cst_5 : f32 to vector<16x400xf32>
    %7 = arith.maximumf %5, %6 : vector<16x400xf32>
    %8 = arith.truncf %7 : vector<16x400xf32> to vector<16x400xbf16>
    %c0_6 = arith.constant 0 : index
    %c0_7 = arith.constant 0 : index
    %9 = vector.load %arg4[%c0_6, %c0_7] : memref<400x1152xbf16, #tpu.memory_space<vmem>>, vector<400x1152xbf16>
    %cst_8 = arith.constant dense<0.000000e+00> : vector<16x1152xf32>
    %10 = tpu.matmul %8, %9, %cst_8 {dimension_numbers = #tpu.dot_dimension_numbers<[1], [0], [0], [1], [0, 0, 1, 1], [], []>} : vector<16x400xbf16>, vector<400x1152xbf16>, vector<16x1152xf32> -> vector<16x1152xf32>
    %c0_9 = arith.constant 0 : index
    %c0_10 = arith.constant 0 : index
    %11 = vector.load %arg5[%c0_9, %c0_10] : memref<1x1152xf32, #tpu.memory_space<vmem>>, vector<1x1152xf32>
    %12 = vector.broadcast %11 : vector<1x1152xf32> to vector<16x1152xf32>
    %13 = arith.addf %10, %12 : vector<16x1152xf32>
    %14 = math.tanh %13 : vector<16x1152xf32>
    %c0_11 = arith.constant 0 : index
    %c0_12 = arith.constant 0 : index
    %15 = vector.load %arg6[%c0_11, %c0_12] : memref<16x1152xf32, #tpu.memory_space<vmem>>, vector<16x1152xf32>
    tpu.vector_store %arg6[%c0_11, %c0_12], %14 {strides = array<i32>} : memref<16x1152xf32, #tpu.memory_space<vmem>>, vector<16x1152xf32>,
    return
  }
  func.func @transform_0(%arg0: i32) -> (i32, i32) {
    %c0_i32 = arith.constant 0 : i32
    %c0_i32_0 = arith.constant 0 : i32
    %c0_i32_1 = arith.constant 0 : i32
    return %c0_i32, %c0_i32_0 : i32, i32
  }
  func.func @transform_1(%arg0: i32) -> (i32, i32) {
    %c0_i32 = arith.constant 0 : i32
    %c0_i32_0 = arith.constant 0 : i32
    %c0_i32_1 = arith.constant 0 : i32
    return %c0_i32, %c0_i32_0 : i32, i32
  }
  func.func @transform_2(%arg0: i32) -> (i32, i32) {
    %c0_i32 = arith.constant 0 : i32
    %c0_i32_0 = arith.constant 0 : i32
    %c0_i32_1 = arith.constant 0 : i32
    return %c0_i32, %c0_i32_0 : i32, i32
  }
  func.func @transform_3(%arg0: i32) -> (i32, i32) {
    %c0_i32 = arith.constant 0 : i32
    %c0_i32_0 = arith.constant 0 : i32
    return %c0_i32, %arg0 : i32, i32
  }
  func.func @transform_4(%arg0: i32) -> (i32, i32) {
    %c0_i32 = arith.constant 0 : i32
    %c0_i32_0 = arith.constant 0 : i32
    return %c0_i32, %arg0 : i32, i32
  }
  func.func @transform_5(%arg0: i32) -> (i32, i32) {
    %c0_i32 = arith.constant 0 : i32
    %c0_i32_0 = arith.constant 0 : i32
    return %c0_i32, %arg0 : i32, i32
  }
}

</mosaic_0001>

<llo_original>
// kernel: tpu_custom_call.1
$region0: #{tpu_custom_call.1}
  #allocation0 [shape = 'u32[]', space=smem, size = 0x4, offset = 0x4, fixed_abs, tag = 'smem constant byte address 0x4 - core index']
  #allocation1 [shape = 'u32[144,128]{1,0:T(1,128)}', space=vmem, size = 0x12000, scoped, tag = 'internal scratch']
  %s0 = inlined_call_operand.hbm [shape: bf16[16,400], index: 0, kind: input, shape index: {}]
  %s1 = inlined_call_operand.hbm [shape: bf16[400,400], index: 1, kind: input, shape index: {}]
  %s2 = inlined_call_operand.hbm [shape: f32[1,400], index: 2, kind: input, shape index: {}]
  %s3 = inlined_call_operand.hbm [shape: bf16[400,4608], index: 3, kind: input, shape index: {}]
  %s4 = inlined_call_operand.hbm [shape: f32[1,4608], index: 4, kind: input, shape index: {}]
  %s5 = inlined_call_operand.hbm [shape: f32[16,4608], index: 5, kind: output, shape index: {}]
  %s6 = sld [smem:[#allocation0]]
  $region73: #{tpu_custom_call.1} parent=0
    _
  %s8 = ssub.s32 1, %s6
  %s9 = scalar_select 0, %s8, %s6
  $region1: #{tpu_custom_call.1} parent=0
    #allocation2 [shape = 'u8[16384]{0}', space=vmem, size = 0x4000, scoped, tag = 'input window, operand 0, single buffered']
    #allocation3 [shape = 's32[2]{0}', space=sflag, size = 0x8, scoped, tag = 'scoped memory for tpu_custom_call.1']
    #allocation4 [shape = 's32[2]{0}', space=sflag, size = 0x8, scoped, tag = 'scoped memory for tpu_custom_call.1']
    #allocation5 [shape = 'u8[409600]{0}', space=vmem, size = 0x64000, scoped, tag = 'input window, operand 1, single buffered']
    #allocation6 [shape = 's32[1]{0}', space=sflag, size = 0x4, scoped, tag = 'scoped memory for tpu_custom_call.1']
    #allocation7 [shape = 'u8[2048]{0}', space=vmem, size = 0x800, scoped, tag = 'input window, operand 2, single buffered']
    #allocation8 [shape = 'u8[1843200]{0}', space=vmem, size = 0x1c2000, scoped, tag = 'input window, operand 3']
    #allocation9 [shape = 's32[2]{0}', space=sflag, size = 0x8, scoped, tag = 'scoped memory for tpu_custom_call.1']
    #allocation10 [shape = 'u8[9216]{0}', space=vmem, size = 0x2400, scoped, tag = 'input window, operand 4']
    #allocation11 [shape = 'u8[147456]{0}', space=vmem, size = 0x24000, scoped, tag = 'output window, operand 0']
    %10 = vsyncpa [#allocation3], 0
    %11 = vsyncpa [#allocation6], 0
    %12 = vsyncpa [#allocation9], 0
    %s13 = scalar_lea.sflag [#allocation9], 1
    %14 = vsyncpa %s13, 0
    %15 = vsyncpa [#allocation4], 0
    %s16 = scalar_lea.sflag [#allocation4], 1
    %17 = vsyncpa %s16, 0
    loop: start=0, step=1, limit=6
    $region2: #{tpu_custom_call.1} parent=1 // loop_pre_header
      _
    $region3: #{tpu_custom_call.1} parent=1 // loop_header
      %s19 = sphi 0, %s23
      %p20 = scmp.ge.s32.totalorder %s19, 6
      %s27 = sphi 0, %s27
      %s29 = sphi 0, %s27
      %s30 = sphi 0, %s29
      %s44 = sphi 0, %s30
      %s48 = sphi 0, %s48
      %s50 = sphi 0, %s48
      %s51 = sphi 0, %s50
      %s65 = sphi 0, %s51
      %s69 = sphi 0, %s69
      %s71 = sphi 0, %s69
      %s72 = sphi 0, %s71
      %s86 = sphi 0, %s72
      %s92 = sphi 0, %s94
      %s95 = sphi 0, %s92
      %s96 = sphi 0, %s95
      %s112 = sphi 0, %s96
      %s118 = sphi 0, %s120
      %s121 = sphi 0, %s118
      %s122 = sphi 0, %s121
      %s138 = sphi 0, %s122
      %s144 = sphi 0, %s146
      %s147 = sphi 0, %s144
      %s148 = sphi 0, %s147
      %s164 = sphi 0, %s148
    $region4: #{tpu_custom_call.1} parent=1 // loop_header_branch
      %22 = sbr.rel (%p20) target = $region8
    $region5: #{tpu_custom_call.1} parent=1 // loop_body
      %s24 = ssub.s32 %s19, 1
      %s25 = ssub.s32 %s19, 2
      %s26 = sadd.s32 %s19, 1
      %s28 = sadd.s32 %s27, 1
      %p31 = scmp.eq.s32.totalorder %s19, 3
      %p32 = scmp.ne.s32.totalorder %s27, %s29
      %p33 = scmp.eq.s32.totalorder %s19, 0
      %p34 = por %p32, %p33
      %p35 = scmp.ne.s32.totalorder %s27, %s29
      %p36 = scmp.eq.s32.totalorder %s24, 3
      %p37 = por %p35, %p36
      %p38 = scmp.ne.s32.totalorder %s29, %s30
      %p39 = scmp.eq.s32.totalorder %s24, 0
      %p40 = por %p38, %p39
      %p41 = scmp.ne.s32.totalorder %s29, %s30
      %p42 = scmp.eq.s32.totalorder %s25, 3
      %p43 = por %p41, %p42
      %p45 = scmp.ne.s32.totalorder %s30, %s44
      %p46 = scmp.eq.s32.totalorder %s25, 0
      %p47 = por %p45, %p46
      %s49 = sadd.s32 %s48, 1
      %p52 = scmp.eq.s32.totalorder %s19, 3
      %p53 = scmp.ne.s32.totalorder %s48, %s50
      %p54 = scmp.eq.s32.totalorder %s19, 0
      %p55 = por %p53, %p54
      %p56 = scmp.ne.s32.totalorder %s48, %s50
      %p57 = scmp.eq.s32.totalorder %s24, 3
      %p58 = por %p56, %p57
      %p59 = scmp.ne.s32.totalorder %s50, %s51
      %p60 = scmp.eq.s32.totalorder %s24, 0
      %p61 = por %p59, %p60
      %p62 = scmp.ne.s32.totalorder %s50, %s51
      %p63 = scmp.eq.s32.totalorder %s25, 3
      %p64 = por %p62, %p63
      %p66 = scmp.ne.s32.totalorder %s51, %s65
      %p67 = scmp.eq.s32.totalorder %s25, 0
      %p68 = por %p66, %p67
      %s70 = sadd.s32 %s69, 1
      %p73 = scmp.eq.s32.totalorder %s19, 3
      %p74 = scmp.ne.s32.totalorder %s69, %s71
      %p75 = scmp.eq.s32.totalorder %s19, 0
      %p76 = por %p74, %p75
      %p77 = scmp.ne.s32.totalorder %s69, %s71
      %p78 = scmp.eq.s32.totalorder %s24, 3
      %p79 = por %p77, %p78
      %p80 = scmp.ne.s32.totalorder %s71, %s72
      %p81 = scmp.eq.s32.totalorder %s24, 0
      %p82 = por %p80, %p81
      %p83 = scmp.ne.s32.totalorder %s71, %s72
      %p84 = scmp.eq.s32.totalorder %s25, 3
      %p85 = por %p83, %p84
      %p87 = scmp.ne.s32.totalorder %s72, %s86
      %p88 = scmp.eq.s32.totalorder %s25, 0
      %p89 = por %p87, %p88
      %s90 = ssub.s32 %s19, %s26
      %p91 = scmp.eq.s32.totalorder %s90, 0
      %s93 = sadd.s32 %s92, 1
      %s94 = scalar_select %p91, %s92, %s93
      %p97 = pneg %p91
      %p98 = scmp.eq.s32.totalorder %s19, 3
      %p99 = por %p97, %p98
      %p100 = scmp.ne.s32.totalorder %s92, %s95
      %p101 = scmp.eq.s32.totalorder %s19, 0
      %p102 = por %p100, %p101
      %p103 = scmp.ne.s32.totalorder %s92, %s95
      %p104 = scmp.eq.s32.totalorder %s24, 3
      %p105 = por %p103, %p104
      %p106 = scmp.ne.s32.totalorder %s95, %s96
      %p107 = scmp.eq.s32.totalorder %s24, 0
      %p108 = por %p106, %p107
      %p109 = scmp.ne.s32.totalorder %s95, %s96
      %p110 = scmp.eq.s32.totalorder %s25, 3
      %p111 = por %p109, %p110
      %p113 = scmp.ne.s32.totalorder %s96, %s112
      %p114 = scmp.eq.s32.totalorder %s25, 0
      %p115 = por %p113, %p114
      %s116 = ssub.s32 %s19, %s26
      %p117 = scmp.eq.s32.totalorder %s116, 0
      %s119 = sadd.s32 %s118, 1
      %s120 = scalar_select %p117, %s118, %s119
      %p123 = pneg %p117
      %p124 = scmp.eq.s32.totalorder %s19, 3
      %p125 = por %p123, %p124
      %p126 = scmp.ne.s32.totalorder %s118, %s121
      %p127 = scmp.eq.s32.totalorder %s19, 0
      %p128 = por %p126, %p127
      %p129 = scmp.ne.s32.totalorder %s118, %s121
      %p130 = scmp.eq.s32.totalorder %s24, 3
      %p131 = por %p129, %p130
      %p132 = scmp.ne.s32.totalorder %s121, %s122
      %p133 = scmp.eq.s32.totalorder %s24, 0
      %p134 = por %p132, %p133
      %p135 = scmp.ne.s32.totalorder %s121, %s122
      %p136 = scmp.eq.s32.totalorder %s25, 3
      %p137 = por %p135, %p136
      %p139 = scmp.ne.s32.totalorder %s122, %s138
      %p140 = scmp.eq.s32.totalorder %s25, 0
      %p141 = por %p139, %p140
      %s142 = ssub.s32 %s19, %s26
      %p143 = scmp.eq.s32.totalorder %s142, 0
      %s145 = sadd.s32 %s144, 1
      %s146 = scalar_select %p143, %s144, %s145
      %p149 = pneg %p143
      %p150 = scmp.eq.s32.totalorder %s19, 3
      %p151 = por %p149, %p150
      %p152 = scmp.ne.s32.totalorder %s144, %s147
      %p153 = scmp.eq.s32.totalorder %s19, 0
      %p154 = por %p152, %p153
      %p155 = scmp.ne.s32.totalorder %s144, %s147
      %p156 = scmp.eq.s32.totalorder %s24, 3
      %p157 = por %p155, %p156
      %p158 = scmp.ne.s32.totalorder %s147, %s148
      %p159 = scmp.eq.s32.totalorder %s24, 0
      %p160 = por %p158, %p159
      %p161 = scmp.ne.s32.totalorder %s147, %s148
      %p162 = scmp.eq.s32.totalorder %s25, 3
      %p163 = por %p161, %p162
      %p165 = scmp.ne.s32.totalorder %s148, %s164
      %p166 = scmp.eq.s32.totalorder %s25, 0
      %p167 = por %p165, %p166
      %p168 = scmp.le.s32.totalorder 1, %s19
      %p169 = scmp.lt.s32.totalorder %s19, 5
      %p170 = pnand %p168, %p169
      %p171 = pneg %p170
      // Predicated region
      $region9: #{tpu_custom_call.1} parent=5 // pred_check
        _
      $region10: #{tpu_custom_call.1} parent=5 // pred_check_branch
        %173 = sbr.rel (%p170) target = $region12
      $region11: #{tpu_custom_call.1} parent=5 // pred_region
        %s174 = ssub.s32 %s19, 1
        // Predicated region
        $region13: #{tpu_custom_call.1} parent=11 // pred_check
          %p175 = pneg %p40
        $region14: #{tpu_custom_call.1} parent=11 // pred_check_branch
          %177 = sbr.rel (%p175) target = $region16
        $region15: #{tpu_custom_call.1} parent=11 // pred_region
          %s179 = ssub.s32 512, 512
          %180 = vsyncadd [#allocation3], %s179
          %s181 = sshll.u32 [#allocation2], 4
          %s182 = int_to_ptr.vmem [resolvable:$true] %s181
          %187 = dma.hbm_to_vmem [thread:$0]  %s0, 512, %s182, [#allocation3], 256, 256, 16
        $region16: #{tpu_custom_call.1} parent=11 // pred_fallthru
          _
        // Predicated region
        $region17: #{tpu_custom_call.1} parent=11 // pred_check
          %p188 = pneg %p61
        $region18: #{tpu_custom_call.1} parent=11 // pred_check_branch
          %190 = sbr.rel (%p188) target = $region20
        $region19: #{tpu_custom_call.1} parent=11 // pred_region
          %s192 = ssub.s32 12800, 12800
          %193 = vsyncadd [#allocation6], %s192
          %s194 = sshll.u32 [#allocation5], 4
          %s195 = int_to_ptr.vmem [resolvable:$true] %s194
          %200 = dma.hbm_to_vmem [thread:$0]  %s1, 12800, %s195, [#allocation6], 256, 256, 16
        $region20: #{tpu_custom_call.1} parent=11 // pred_fallthru
          _
        // Predicated region
        $region21: #{tpu_custom_call.1} parent=11 // pred_check
          %p201 = pneg %p82
        $region22: #{tpu_custom_call.1} parent=11 // pred_check_branch
          %203 = sbr.rel (%p201) target = $region24
        $region23: #{tpu_custom_call.1} parent=11 // pred_region
          %s205 = ssub.s32 64, 64
          %206 = vsyncadd [#allocation6], %s205
          %s208 = sshll.u32 [#allocation7], 4
          %s209 = int_to_ptr.vmem [resolvable:$true] %s208
          %211 = dma.hbm_to_vmem [thread:$0]  %s2, 64, %s209, [#allocation6]
        $region24: #{tpu_custom_call.1} parent=11 // pred_fallthru
          _
      $region12: #{tpu_custom_call.1} parent=5 // pred_fallthru
        _
      %p212 = scmp.lt.s32.totalorder %s19, 4
      // Predicated region
      $region25: #{tpu_custom_call.1} parent=5 // pred_check
        %p213 = pneg %p212
      $region26: #{tpu_custom_call.1} parent=5 // pred_check_branch
        %215 = sbr.rel (%p213) target = $region28
      $region27: #{tpu_custom_call.1} parent=5 // pred_region
        // Predicated region
        $region29: #{tpu_custom_call.1} parent=27 // pred_check
          %p216 = pneg %p102
        $region30: #{tpu_custom_call.1} parent=27 // pred_check_branch
          %218 = sbr.rel (%p216) target = $region32
        $region31: #{tpu_custom_call.1} parent=27 // pred_region
          %s219 = sand.u32 %s19, 1
          %s220 = scalar_lea.sflag [#allocation9], %s219
          %s221 = sand.u32 %s92, 1
          %s222 = smul.addr %s221, 1800
          %s223 = scalar_lea.vmem [#allocation8], %s222
          %s224 = smul.u32 9, %s19
          %s226 = ssub.s32 28800, 28800
          %227 = vsyncadd %s220, %s226
          %s228 = smul.addr %s224, 64
          %s229 = scalar_lea.hbm %s3, %s228
          %s230 = sshll.u32 %s223, 4
          %s231 = int_to_ptr.vmem [resolvable:$true] %s230
          %236 = dma.hbm_to_vmem [thread:$0]  %s229, 28800, %s231, %s220, 2304, 576, 36
        $region32: #{tpu_custom_call.1} parent=27 // pred_fallthru
          _
        // Predicated region
        $region33: #{tpu_custom_call.1} parent=27 // pred_check
          %p237 = pneg %p128
        $region34: #{tpu_custom_call.1} parent=27 // pred_check_branch
          %239 = sbr.rel (%p237) target = $region36
        $region35: #{tpu_custom_call.1} parent=27 // pred_region
          %s240 = sand.u32 %s19, 1
          %s241 = scalar_lea.sflag [#allocation9], %s240
          %s242 = sand.u32 %s118, 1
          %s243 = smul.addr %s242, 9
          %s244 = scalar_lea.vmem [#allocation10], %s243
          %s245 = smul.u32 9, %s19
          %s247 = ssub.s32 144, 144
          %248 = vsyncadd %s241, %s247
          %s249 = smul.addr %s245, 16
          %s250 = scalar_lea.hbm %s4, %s249
          %s252 = sshll.u32 %s244, 4
          %s253 = int_to_ptr.vmem [resolvable:$true] %s252
          %255 = dma.hbm_to_vmem [thread:$0]  %s250, 144, %s253, %s241
        $region36: #{tpu_custom_call.1} parent=27 // pred_fallthru
          _
      $region28: #{tpu_custom_call.1} parent=5 // pred_fallthru
        _
      %p256 = scmp.le.s32.totalorder 1, %s19
      %p257 = scmp.lt.s32.totalorder %s19, 5
      %p258 = pnand %p256, %p257
      %p259 = pneg %p258
      // Predicated region
      $region37: #{tpu_custom_call.1} parent=5 // pred_check
        _
      $region38: #{tpu_custom_call.1} parent=5 // pred_check_branch
        %261 = sbr.rel (%p258) target = $region40
      $region39: #{tpu_custom_call.1} parent=5 // pred_region
        %s262 = ssub.s32 %s19, 1
        // Predicated region
        $region41: #{tpu_custom_call.1} parent=39 // pred_check
          %p263 = pneg %p40
        $region42: #{tpu_custom_call.1} parent=39 // pred_check_branch
          %265 = sbr.rel (%p263) target = $region44
        $region43: #{tpu_custom_call.1} parent=39 // pred_region
          %266 = dma.done [#allocation3], 512
        $region44: #{tpu_custom_call.1} parent=39 // pred_fallthru
          _
        // Predicated region
        $region45: #{tpu_custom_call.1} parent=39 // pred_check
          %p267 = pneg %p61
        $region46: #{tpu_custom_call.1} parent=39 // pred_check_branch
          %269 = sbr.rel (%p267) target = $region48
        $region47: #{tpu_custom_call.1} parent=39 // pred_region
          %270 = dma.done [#allocation6], 12800
        $region48: #{tpu_custom_call.1} parent=39 // pred_fallthru
          _
        // Predicated region
        $region49: #{tpu_custom_call.1} parent=39 // pred_check
          %p271 = pneg %p82
        $region50: #{tpu_custom_call.1} parent=39 // pred_check_branch
          %273 = sbr.rel (%p271) target = $region52
        $region51: #{tpu_custom_call.1} parent=39 // pred_region
          %274 = dma.done [#allocation6], 64
        $region52: #{tpu_custom_call.1} parent=39 // pred_fallthru
          _
        %s275 = sand.u32 %s24, 1
        %s276 = scalar_lea.sflag [#allocation9], %s275
        %s277 = sand.u32 %s95, 1
        %s278 = smul.addr %s277, 1800
        %s279 = scalar_lea.vmem [#allocation8], %s278
        // Predicated region
        $region53: #{tpu_custom_call.1} parent=39 // pred_check
          %p280 = pneg %p108
        $region54: #{tpu_custom_call.1} parent=39 // pred_check_branch
          %282 = sbr.rel (%p280) target = $region56
        $region55: #{tpu_custom_call.1} parent=39 // pred_region
          %283 = dma.done %s276, 28800
        $region56: #{tpu_custom_call.1} parent=39 // pred_fallthru
          _
        %s284 = sand.u32 %s24, 1
        %s285 = scalar_lea.sflag [#allocation9], %s284
        %s286 = sand.u32 %s121, 1
        %s287 = smul.addr %s286, 9
        %s288 = scalar_lea.vmem [#allocation10], %s287
        // Predicated region
        $region57: #{tpu_custom_call.1} parent=39 // pred_check
          %p289 = pneg %p134
        $region58: #{tpu_custom_call.1} parent=39 // pred_check_branch
          %291 = sbr.rel (%p289) target = $region60
        $region59: #{tpu_custom_call.1} parent=39 // pred_region
          %292 = dma.done %s285, 144
        $region60: #{tpu_custom_call.1} parent=39 // pred_fallthru
          _
        %p293 = pneg %p40
        %p294 = pneg %p37
        %p295 = pneg %p61
        %p296 = pneg %p58
        %p297 = pneg %p82
        %p298 = pneg %p79
        %s299 = sand.u32 %s24, 1
        %s300 = scalar_lea.sflag [#allocation9], %s299
        %s301 = sand.u32 %s95, 1
        %s302 = smul.addr %s301, 1800
        %s303 = scalar_lea.vmem [#allocation8], %s302
        %p304 = pneg %p108
        %p305 = pneg %p105
        %s306 = sand.u32 %s24, 1
        %s307 = scalar_lea.sflag [#allocation9], %s306
        %s308 = sand.u32 %s121, 1
        %s309 = smul.addr %s308, 9
        %s310 = scalar_lea.vmem [#allocation10], %s309
        %p311 = pneg %p134
        %p312 = pneg %p131
        %p313 = pneg %p160
        %p314 = pneg %p157
        %s315 = sand.u32 %s147, 1
        %s316 = scalar_lea.sflag [#allocation4], %s315
        %s317 = sand.u32 %s147, 1
        %s318 = smul.addr %s317, 144
        %s319 = scalar_lea.vmem [#allocation11], %s318
        %s320 = smul.u32 9, %s24
        %s321 = smul.u32 9, %s24
        %s322 = smul.u32 9, %s24
        %v324 = vld [vmem:[#allocation2] sm:$0xff]
        %v325 = vld [vmem:[#allocation2 + $0x8] sm:$0xff]
        %v326 = vld [vmem:[#allocation2 + $0x10] sm:$0xff]
        %v327 = vld [vmem:[#allocation2 + $0x18] sm:$0xff]
        %v328 = vld [vmem:[#allocation5] sm:$0xff]
        %v329 = vld [vmem:[#allocation5 + $0x8] sm:$0xff]
        %v330 = vld [vmem:[#allocation5 + $0x10] sm:$0xff]
        %v331 = vld [vmem:[#allocation5 + $0x18] sm:$0xff]
        %v332 = vld [vmem:[#allocation5 + $0x20] sm:$0xff]
        %v333 = vld [vmem:[#allocation5 + $0x28] sm:$0xff]
        %v334 = vld [vmem:[#allocation5 + $0x30] sm:$0xff]
        %v335 = vld [vmem:[#allocation5 + $0x38] sm:$0xff]
        %v336 = vld [vmem:[#allocation5 + $0x40] sm:$0xff]
        %v337 = vld [vmem:[#allocation5 + $0x48] sm:$0xff]
        %v338 = vld [vmem:[#allocation5 + $0x50] sm:$0xff]
        %v339 = vld [vmem:[#allocation5 + $0x58] sm:$0xff]
        %v340 = vld [vmem:[#allocation5 + $0x60] sm:$0xff]
        %v341 = vld [vmem:[#allocation5 + $0x68] sm:$0xff]
        %v342 = vld [vmem:[#allocation5 + $0x70] sm:$0xff]
        %v343 = vld [vmem:[#allocation5 + $0x78] sm:$0xff]
        %v344 = vld [vmem:[#allocation5 + $0x80] sm:$0xff]
        %v345 = vld [vmem:[#allocation5 + $0x88] sm:$0xff]
        %v346 = vld [vmem:[#allocation5 + $0x90] sm:$0xff]
        %v347 = vld [vmem:[#allocation5 + $0x98] sm:$0xff]
        %v348 = vld [vmem:[#allocation5 + $0xa0] sm:$0xff]
        %v349 = vld [vmem:[#allocation5 + $0xa8] sm:$0xff]
        %v350 = vld [vmem:[#allocation5 + $0xb0] sm:$0xff]
        %v351 = vld [vmem:[#allocation5 + $0xb8] sm:$0xff]
        %v352 = vld [vmem:[#allocation5 + $0xc0] sm:$0xff]
        %v353 = vld [vmem:[#allocation5 + $0xc8] sm:$0xff]
        %v354 = vld [vmem:[#allocation5 + $0xd0] sm:$0xff]
        %v355 = vld [vmem:[#allocation5 + $0xd8] sm:$0xff]
        %v356 = vld [vmem:[#allocation5 + $0xe0] sm:$0xff]
        %v357 = vld [vmem:[#allocation5 + $0xe8] sm:$0xff]
        %v358 = vld [vmem:[#allocation5 + $0xf0] sm:$0xff]
        %v359 = vld [vmem:[#allocation5 + $0xf8] sm:$0xff]
        %v360 = vld [vmem:[#allocation5 + $0x100] sm:$0xff]
        %v361 = vld [vmem:[#allocation5 + $0x108] sm:$0xff]
        %v362 = vld [vmem:[#allocation5 + $0x110] sm:$0xff]
        %v363 = vld [vmem:[#allocation5 + $0x118] sm:$0xff]
        %v364 = vld [vmem:[#allocation5 + $0x120] sm:$0xff]
        %v365 = vld [vmem:[#allocation5 + $0x128] sm:$0xff]
        %v366 = vld [vmem:[#allocation5 + $0x130] sm:$0xff]
        %v367 = vld [vmem:[#allocation5 + $0x138] sm:$0xff]
        %v368 = vld [vmem:[#allocation5 + $0x140] sm:$0xff]
        %v369 = vld [vmem:[#allocation5 + $0x148] sm:$0xff]
        %v370 = vld [vmem:[#allocation5 + $0x150] sm:$0xff]
        %v371 = vld [vmem:[#allocation5 + $0x158] sm:$0xff]
        %v372 = vld [vmem:[#allocation5 + $0x160] sm:$0xff]
        %v373 = vld [vmem:[#allocation5 + $0x168] sm:$0xff]
        %v374 = vld [vmem:[#allocation5 + $0x170] sm:$0xff]
        %v375 = vld [vmem:[#allocation5 + $0x178] sm:$0xff]
        %v376 = vld [vmem:[#allocation5 + $0x180] sm:$0xff]
        %v377 = vld [vmem:[#allocation5 + $0x188] sm:$0xff]
        %v378 = vld [vmem:[#allocation5 + $0x190] sm:$0xff]
        %v379 = vld [vmem:[#allocation5 + $0x198] sm:$0xff]
        %v380 = vld [vmem:[#allocation5 + $0x1a0] sm:$0xff]
        %v381 = vld [vmem:[#allocation5 + $0x1a8] sm:$0xff]
        %v382 = vld [vmem:[#allocation5 + $0x1b0] sm:$0xff]
        %v383 = vld [vmem:[#allocation5 + $0x1b8] sm:$0xff]
        %v384 = vld [vmem:[#allocation5 + $0x1c0] sm:$0xff]
        %v385 = vld [vmem:[#allocation5 + $0x1c8] sm:$0xff]
        %v386 = vld [vmem:[#allocation5 + $0x1d0] sm:$0xff]
        %v387 = vld [vmem:[#allocation5 + $0x1d8] sm:$0xff]
        %v388 = vld [vmem:[#allocation5 + $0x1e0] sm:$0xff]
        %v389 = vld [vmem:[#allocation5 + $0x1e8] sm:$0xff]
        %v390 = vld [vmem:[#allocation5 + $0x1f0] sm:$0xff]
        %v391 = vld [vmem:[#allocation5 + $0x1f8] sm:$0xff]
        %v392 = vld [vmem:[#allocation5 + $0x200] sm:$0xff]
        %v393 = vld [vmem:[#allocation5 + $0x208] sm:$0xff]
        %v394 = vld [vmem:[#allocation5 + $0x210] sm:$0xff]
        %v395 = vld [vmem:[#allocation5 + $0x218] sm:$0xff]
        %v396 = vld [vmem:[#allocation5 + $0x220] sm:$0xff]
        %v397 = vld [vmem:[#allocation5 + $0x228] sm:$0xff]
        %v398 = vld [vmem:[#allocation5 + $0x230] sm:$0xff]
        %v399 = vld [vmem:[#allocation5 + $0x238] sm:$0xff]
        %v400 = vld [vmem:[#allocation5 + $0x240] sm:$0xff]
        %v401 = vld [vmem:[#allocation5 + $0x248] sm:$0xff]
        %v402 = vld [vmem:[#allocation5 + $0x250] sm:$0xff]
        %v403 = vld [vmem:[#allocation5 + $0x258] sm:$0xff]
        %v404 = vld [vmem:[#allocation5 + $0x260] sm:$0xff]
        %v405 = vld [vmem:[#allocation5 + $0x268] sm:$0xff]
        %v406 = vld [vmem:[#allocation5 + $0x270] sm:$0xff]
        %v407 = vld [vmem:[#allocation5 + $0x278] sm:$0xff]
        %v408 = vld [vmem:[#allocation5 + $0x280] sm:$0xff]
        %v409 = vld [vmem:[#allocation5 + $0x288] sm:$0xff]
        %v410 = vld [vmem:[#allocation5 + $0x290] sm:$0xff]
        %v411 = vld [vmem:[#allocation5 + $0x298] sm:$0xff]
        %v412 = vld [vmem:[#allocation5 + $0x2a0] sm:$0xff]
        %v413 = vld [vmem:[#allocation5 + $0x2a8] sm:$0xff]
        %v414 = vld [vmem:[#allocation5 + $0x2b0] sm:$0xff]
        %v415 = vld [vmem:[#allocation5 + $0x2b8] sm:$0xff]
        %v416 = vld [vmem:[#allocation5 + $0x2c0] sm:$0xff]
        %v417 = vld [vmem:[#allocation5 + $0x2c8] sm:$0xff]
        %v418 = vld [vmem:[#allocation5 + $0x2d0] sm:$0xff]
        %v419 = vld [vmem:[#allocation5 + $0x2d8] sm:$0xff]
        %v420 = vld [vmem:[#allocation5 + $0x2e0] sm:$0xff]
        %v421 = vld [vmem:[#allocation5 + $0x2e8] sm:$0xff]
        %v422 = vld [vmem:[#allocation5 + $0x2f0] sm:$0xff]
        %v423 = vld [vmem:[#allocation5 + $0x2f8] sm:$0xff]
        %v424 = vld [vmem:[#allocation5 + $0x300] sm:$0xff]
        %v425 = vld [vmem:[#allocation5 + $0x308] sm:$0xff]
        %v426 = vld [vmem:[#allocation5 + $0x310] sm:$0xff]
        %v427 = vld [vmem:[#allocation5 + $0x318] sm:$0xff]
        %v428 = vld [vmem:[#allocation7] sm:$0xf]
        %v430 = vlaneseq
        %v431 = vshrl.u32 %v430, 7
        %v432 = vsub.s32 0, %v431
        %v433 = vrot.slane %v428, %v432
        %v434 = vlaneseq
        %v435 = vshrl.u32 %v434, 7
        %v436 = vsub.s32 1, %v435
        %v437 = vrot.slane %v428, %v436
        %v438 = vlaneseq
        %v439 = vshrl.u32 %v438, 7
        %v440 = vsub.s32 2, %v439
        %v441 = vrot.slane %v428, %v440
        %v442 = vlaneseq
        %v443 = vshrl.u32 %v442, 7
        %v444 = vsub.s32 3, %v443
        %v445 = vrot.slane %v428, %v444
        %v454 = vunpack.c.l.b16 %v324
        %v455 = vunpack.c.h.b16 %v324
        %v456 = vunpack.c.l.b16 %v325
        %v457 = vunpack.c.h.b16 %v325
        %v458 = vunpack.c.l.b16 %v326
        %v459 = vunpack.c.h.b16 %v326
        %v460 = vunpack.c.l.b16 %v327
        %v461 = vunpack.c.h.b16 %v327
        %v462 = vpack.c.b16 %v458, %v454
        %v463 = vpack.c.b16 %v459, %v455
        %v464 = vpack.c.b16 %v460, %v456
        %v465 = vpack.c.b16 %v461, %v457
        %v569 = vunpack.c.l.b16 %v328
        %v570 = vunpack.c.h.b16 %v328
        %v571 = vunpack.c.l.b16 %v329
        %v572 = vunpack.c.h.b16 %v329
        %v573 = vunpack.c.l.b16 %v330
        %v574 = vunpack.c.h.b16 %v330
        %v575 = vunpack.c.l.b16 %v331
        %v576 = vunpack.c.h.b16 %v331
        %v577 = vunpack.c.l.b16 %v332
        %v578 = vunpack.c.h.b16 %v332
        %v579 = vunpack.c.l.b16 %v333
        %v580 = vunpack.c.h.b16 %v333
        %v581 = vunpack.c.l.b16 %v334
        %v582 = vunpack.c.h.b16 %v334
        %v583 = vunpack.c.l.b16 %v335
        %v584 = vunpack.c.h.b16 %v335
        %v585 = vunpack.c.l.b16 %v336
        %v586 = vunpack.c.h.b16 %v336
        %v587 = vunpack.c.l.b16 %v337
        %v588 = vunpack.c.h.b16 %v337
        %v589 = vunpack.c.l.b16 %v338
        %v590 = vunpack.c.h.b16 %v338
        %v591 = vunpack.c.l.b16 %v339
        %v592 = vunpack.c.h.b16 %v339
        %v593 = vunpack.c.l.b16 %v340
        %v594 = vunpack.c.h.b16 %v340
        %v595 = vunpack.c.l.b16 %v341
        %v596 = vunpack.c.h.b16 %v341
        %v597 = vunpack.c.l.b16 %v342
        %v598 = vunpack.c.h.b16 %v342
        %v599 = vunpack.c.l.b16 %v343
        %v600 = vunpack.c.h.b16 %v343
        %v601 = vunpack.c.l.b16 %v344
        %v602 = vunpack.c.h.b16 %v344
        %v603 = vunpack.c.l.b16 %v345
        %v604 = vunpack.c.h.b16 %v345
        %v605 = vunpack.c.l.b16 %v346
        %v606 = vunpack.c.h.b16 %v346
        %v607 = vunpack.c.l.b16 %v347
        %v608 = vunpack.c.h.b16 %v347
        %v609 = vunpack.c.l.b16 %v348
        %v610 = vunpack.c.h.b16 %v348
        %v611 = vunpack.c.l.b16 %v349
        %v612 = vunpack.c.h.b16 %v349
        %v613 = vunpack.c.l.b16 %v350
        %v614 = vunpack.c.h.b16 %v350
        %v615 = vunpack.c.l.b16 %v351
        %v616 = vunpack.c.h.b16 %v351
        %v617 = vunpack.c.l.b16 %v352
        %v618 = vunpack.c.h.b16 %v352
        %v619 = vunpack.c.l.b16 %v353
        %v620 = vunpack.c.h.b16 %v353
        %v621 = vunpack.c.l.b16 %v354
        %v622 = vunpack.c.h.b16 %v354
        %v623 = vunpack.c.l.b16 %v355
        %v624 = vunpack.c.h.b16 %v355
        %v625 = vunpack.c.l.b16 %v356
        %v626 = vunpack.c.h.b16 %v356
        %v627 = vunpack.c.l.b16 %v357
        %v628 = vunpack.c.h.b16 %v357
        %v629 = vunpack.c.l.b16 %v358
        %v630 = vunpack.c.h.b16 %v358
        %v631 = vunpack.c.l.b16 %v359
        %v632 = vunpack.c.h.b16 %v359
        %v633 = vunpack.c.l.b16 %v360
        %v634 = vunpack.c.h.b16 %v360
        %v635 = vunpack.c.l.b16 %v361
        %v636 = vunpack.c.h.b16 %v361
        %v637 = vunpack.c.l.b16 %v362
        %v638 = vunpack.c.h.b16 %v362
        %v639 = vunpack.c.l.b16 %v363
        %v640 = vunpack.c.h.b16 %v363
        %v641 = vunpack.c.l.b16 %v364
        %v642 = vunpack.c.h.b16 %v364
        %v643 = vunpack.c.l.b16 %v365
        %v644 = vunpack.c.h.b16 %v365
        %v645 = vunpack.c.l.b16 %v366
        %v646 = vunpack.c.h.b16 %v366
        %v647 = vunpack.c.l.b16 %v367
        %v648 = vunpack.c.h.b16 %v367
        %v649 = vunpack.c.l.b16 %v368
        %v650 = vunpack.c.h.b16 %v368
        %v651 = vunpack.c.l.b16 %v369
        %v652 = vunpack.c.h.b16 %v369
        %v653 = vunpack.c.l.b16 %v370
        %v654 = vunpack.c.h.b16 %v370
        %v655 = vunpack.c.l.b16 %v371
        %v656 = vunpack.c.h.b16 %v371
        %v657 = vunpack.c.l.b16 %v372
        %v658 = vunpack.c.h.b16 %v372
        %v659 = vunpack.c.l.b16 %v373
        %v660 = vunpack.c.h.b16 %v373
        %v661 = vunpack.c.l.b16 %v374
        %v662 = vunpack.c.h.b16 %v374
        %v663 = vunpack.c.l.b16 %v375
        %v664 = vunpack.c.h.b16 %v375
        %v665 = vunpack.c.l.b16 %v376
        %v666 = vunpack.c.h.b16 %v376
        %v667 = vunpack.c.l.b16 %v377
        %v668 = vunpack.c.h.b16 %v377
        %v669 = vunpack.c.l.b16 %v378
        %v670 = vunpack.c.h.b16 %v378
        %v671 = vunpack.c.l.b16 %v379
        %v672 = vunpack.c.h.b16 %v379
        %v673 = vunpack.c.l.b16 %v380
        %v674 = vunpack.c.h.b16 %v380
        %v675 = vunpack.c.l.b16 %v381
        %v676 = vunpack.c.h.b16 %v381
        %v677 = vunpack.c.l.b16 %v382
        %v678 = vunpack.c.h.b16 %v382
        %v679 = vunpack.c.l.b16 %v383
        %v680 = vunpack.c.h.b16 %v383
        %v681 = vunpack.c.l.b16 %v384
        %v682 = vunpack.c.h.b16 %v384
        %v683 = vunpack.c.l.b16 %v385
        %v684 = vunpack.c.h.b16 %v385
        %v685 = vunpack.c.l.b16 %v386
        %v686 = vunpack.c.h.b16 %v386
        %v687 = vunpack.c.l.b16 %v387
        %v688 = vunpack.c.h.b16 %v387
        %v689 = vunpack.c.l.b16 %v388
        %v690 = vunpack.c.h.b16 %v388
        %v691 = vunpack.c.l.b16 %v389
        %v692 = vunpack.c.h.b16 %v389
        %v693 = vunpack.c.l.b16 %v390
        %v694 = vunpack.c.h.b16 %v390
        %v695 = vunpack.c.l.b16 %v391
        %v696 = vunpack.c.h.b16 %v391
        %v697 = vunpack.c.l.b16 %v392
        %v698 = vunpack.c.h.b16 %v392
        %v699 = vunpack.c.l.b16 %v393
        %v700 = vunpack.c.h.b16 %v393
        %v701 = vunpack.c.l.b16 %v394
        %v702 = vunpack.c.h.b16 %v394
        %v703 = vunpack.c.l.b16 %v395
        %v704 = vunpack.c.h.b16 %v395
        %v705 = vunpack.c.l.b16 %v396
        %v706 = vunpack.c.h.b16 %v396
        %v707 = vunpack.c.l.b16 %v397
        %v708 = vunpack.c.h.b16 %v397
        %v709 = vunpack.c.l.b16 %v398
        %v710 = vunpack.c.h.b16 %v398
        %v711 = vunpack.c.l.b16 %v399
        %v712 = vunpack.c.h.b16 %v399
        %v713 = vunpack.c.l.b16 %v400
        %v714 = vunpack.c.h.b16 %v400
        %v715 = vunpack.c.l.b16 %v401
        %v716 = vunpack.c.h.b16 %v401
        %v717 = vunpack.c.l.b16 %v402
        %v718 = vunpack.c.h.b16 %v402
        %v719 = vunpack.c.l.b16 %v403
        %v720 = vunpack.c.h.b16 %v403
        %v721 = vunpack.c.l.b16 %v404
        %v722 = vunpack.c.h.b16 %v404
        %v723 = vunpack.c.l.b16 %v405
        %v724 = vunpack.c.h.b16 %v405
        %v725 = vunpack.c.l.b16 %v406
        %v726 = vunpack.c.h.b16 %v406
        %v727 = vunpack.c.l.b16 %v407
        %v728 = vunpack.c.h.b16 %v407
        %v729 = vunpack.c.l.b16 %v408
        %v730 = vunpack.c.h.b16 %v408
        %v731 = vunpack.c.l.b16 %v409
        %v732 = vunpack.c.h.b16 %v409
        %v733 = vunpack.c.l.b16 %v410
        %v734 = vunpack.c.h.b16 %v410
        %v735 = vunpack.c.l.b16 %v411
        %v736 = vunpack.c.h.b16 %v411
        %v737 = vunpack.c.l.b16 %v412
        %v738 = vunpack.c.h.b16 %v412
        %v739 = vunpack.c.l.b16 %v413
        %v740 = vunpack.c.h.b16 %v413
        %v741 = vunpack.c.l.b16 %v414
        %v742 = vunpack.c.h.b16 %v414
        %v743 = vunpack.c.l.b16 %v415
        %v744 = vunpack.c.h.b16 %v415
        %v745 = vunpack.c.l.b16 %v416
        %v746 = vunpack.c.h.b16 %v416
        %v747 = vunpack.c.l.b16 %v417
        %v748 = vunpack.c.h.b16 %v417
        %v749 = vunpack.c.l.b16 %v418
        %v750 = vunpack.c.h.b16 %v418
        %v751 = vunpack.c.l.b16 %v419
        %v752 = vunpack.c.h.b16 %v419
        %v753 = vunpack.c.l.b16 %v420
        %v754 = vunpack.c.h.b16 %v420
        %v755 = vunpack.c.l.b16 %v421
        %v756 = vunpack.c.h.b16 %v421
        %v757 = vunpack.c.l.b16 %v422
        %v758 = vunpack.c.h.b16 %v422
        %v759 = vunpack.c.l.b16 %v423
        %v760 = vunpack.c.h.b16 %v423
        %v761 = vunpack.c.l.b16 %v424
        %v762 = vunpack.c.h.b16 %v424
        %v763 = vunpack.c.l.b16 %v425
        %v764 = vunpack.c.h.b16 %v425
        %v765 = vunpack.c.l.b16 %v426
        %v766 = vunpack.c.h.b16 %v426
        %v767 = vunpack.c.l.b16 %v427
        %v768 = vunpack.c.h.b16 %v427
        %v769 = vpack.c.b16 %v573, %v569
        %v770 = vpack.c.b16 %v574, %v570
        %v771 = vpack.c.b16 %v575, %v571
        %v772 = vpack.c.b16 %v576, %v572
        %v773 = vpack.c.b16 %v581, %v577
        %v774 = vpack.c.b16 %v582, %v578
        %v775 = vpack.c.b16 %v583, %v579
        %v776 = vpack.c.b16 %v584, %v580
        %v777 = vpack.c.b16 %v589, %v585
        %v778 = vpack.c.b16 %v590, %v586
        %v779 = vpack.c.b16 %v591, %v587
        %v780 = vpack.c.b16 %v592, %v588
        %v781 = vpack.c.b16 %v597, %v593
        %v782 = vpack.c.b16 %v598, %v594
        %v783 = vpack.c.b16 %v599, %v595
        %v784 = vpack.c.b16 %v600, %v596
        %v785 = vpack.c.b16 %v605, %v601
        %v786 = vpack.c.b16 %v606, %v602
        %v787 = vpack.c.b16 %v607, %v603
        %v788 = vpack.c.b16 %v608, %v604
        %v789 = vpack.c.b16 %v613, %v609
        %v790 = vpack.c.b16 %v614, %v610
        %v791 = vpack.c.b16 %v615, %v611
        %v792 = vpack.c.b16 %v616, %v612
        %v793 = vpack.c.b16 %v621, %v617
        %v794 = vpack.c.b16 %v622, %v618
        %v795 = vpack.c.b16 %v623, %v619
        %v796 = vpack.c.b16 %v624, %v620
        %v797 = vpack.c.b16 %v629, %v625
        %v798 = vpack.c.b16 %v630, %v626
        %v799 = vpack.c.b16 %v631, %v627
        %v800 = vpack.c.b16 %v632, %v628
        %v801 = vpack.c.b16 %v637, %v633
        %v802 = vpack.c.b16 %v638, %v634
        %v803 = vpack.c.b16 %v639, %v635
        %v804 = vpack.c.b16 %v640, %v636
        %v805 = vpack.c.b16 %v645, %v641
        %v806 = vpack.c.b16 %v646, %v642
        %v807 = vpack.c.b16 %v647, %v643
        %v808 = vpack.c.b16 %v648, %v644
        %v809 = vpack.c.b16 %v653, %v649
        %v810 = vpack.c.b16 %v654, %v650
        %v811 = vpack.c.b16 %v655, %v651
        %v812 = vpack.c.b16 %v656, %v652
        %v813 = vpack.c.b16 %v661, %v657
        %v814 = vpack.c.b16 %v662, %v658
        %v815 = vpack.c.b16 %v663, %v659
        %v816 = vpack.c.b16 %v664, %v660
        %v817 = vpack.c.b16 %v669, %v665
        %v818 = vpack.c.b16 %v670, %v666
        %v819 = vpack.c.b16 %v671, %v667
        %v820 = vpack.c.b16 %v672, %v668
        %v821 = vpack.c.b16 %v677, %v673
        %v822 = vpack.c.b16 %v678, %v674
        %v823 = vpack.c.b16 %v679, %v675
        %v824 = vpack.c.b16 %v680, %v676
        %v825 = vpack.c.b16 %v685, %v681
        %v826 = vpack.c.b16 %v686, %v682
        %v827 = vpack.c.b16 %v687, %v683
        %v828 = vpack.c.b16 %v688, %v684
        %v829 = vpack.c.b16 %v693, %v689
        %v830 = vpack.c.b16 %v694, %v690
        %v831 = vpack.c.b16 %v695, %v691
        %v832 = vpack.c.b16 %v696, %v692
        %v833 = vpack.c.b16 %v701, %v697
        %v834 = vpack.c.b16 %v702, %v698
        %v835 = vpack.c.b16 %v703, %v699
        %v836 = vpack.c.b16 %v704, %v700
        %v837 = vpack.c.b16 %v709, %v705
        %v838 = vpack.c.b16 %v710, %v706
        %v839 = vpack.c.b16 %v711, %v707
        %v840 = vpack.c.b16 %v712, %v708
        %v841 = vpack.c.b16 %v717, %v713
        %v842 = vpack.c.b16 %v718, %v714
        %v843 = vpack.c.b16 %v719, %v715
        %v844 = vpack.c.b16 %v720, %v716
        %v845 = vpack.c.b16 %v725, %v721
        %v846 = vpack.c.b16 %v726, %v722
        %v847 = vpack.c.b16 %v727, %v723
        %v848 = vpack.c.b16 %v728, %v724
        %v849 = vpack.c.b16 %v733, %v729
        %v850 = vpack.c.b16 %v734, %v730
        %v851 = vpack.c.b16 %v735, %v731
        %v852 = vpack.c.b16 %v736, %v732
        %v853 = vpack.c.b16 %v741, %v737
        %v854 = vpack.c.b16 %v742, %v738
        %v855 = vpack.c.b16 %v743, %v739
        %v856 = vpack.c.b16 %v744, %v740
        %v857 = vpack.c.b16 %v749, %v745
        %v858 = vpack.c.b16 %v750, %v746
        %v859 = vpack.c.b16 %v751, %v747
        %v860 = vpack.c.b16 %v752, %v748
        %v861 = vpack.c.b16 %v757, %v753
        %v862 = vpack.c.b16 %v758, %v754
        %v863 = vpack.c.b16 %v759, %v755
        %v864 = vpack.c.b16 %v760, %v756
        %v865 = vpack.c.b16 %v765, %v761
        %v866 = vpack.c.b16 %v766, %v762
        %v867 = vpack.c.b16 %v767, %v763
        %v868 = vpack.c.b16 %v768, %v764
        %vm969 = vcmask 130048
        %v971 = vsel %vm969, %v465, 0
        %973 = vmatprep.subr.bf16.mxu0 %v798
        %974 = vmatpush1.bf16.msra.mxu0 %v797
        %975 = vmatprep.subr.bf16.mxu0 %v794
        %976 = vmatpush1.bf16.msra.mxu0 %v793
        %977 = vmatprep.subr.bf16.mxu0 %v790
        %978 = vmatpush1.bf16.msra.mxu0 %v789
        %979 = vmatprep.subr.bf16.mxu0 %v786
        %980 = vmatpush1.bf16.msra.mxu0 %v785
        %981 = vmatprep.subr.bf16.mxu0 %v782
        %982 = vmatpush1.bf16.msra.mxu0 %v781
        %983 = vmatprep.subr.bf16.mxu0 %v778
        %984 = vmatpush1.bf16.msra.mxu0 %v777
        %985 = vmatprep.subr.bf16.mxu0 %v774
        %986 = vmatpush1.bf16.msra.mxu0 %v773
        %987 = vmatprep.subr.bf16.mxu0 %v770
        %988 = vmatpush1.bf16.msra.mxu0 %v769
        %989 = vmatprep.subr.bf16.mxu0 %v830
        %990 = vmatpush2.bf16.msra.mxu0 %v829
        %991 = vmatprep.subr.bf16.mxu0 %v826
        %992 = vmatpush2.bf16.msra.mxu0 %v825
        %993 = vmatprep.subr.bf16.mxu0 %v822
        %994 = vmatpush2.bf16.msra.mxu0 %v821
        %995 = vmatprep.subr.bf16.mxu0 %v818
        %996 = vmatpush2.bf16.msra.mxu0 %v817
        %997 = vmatprep.subr.bf16.mxu0 %v814
        %998 = vmatpush2.bf16.msra.mxu0 %v813
        %999 = vmatprep.subr.bf16.mxu0 %v810
        %1000 = vmatpush2.bf16.msra.mxu0 %v809
        %1001 = vmatprep.subr.bf16.mxu0 %v806
        %1002 = vmatpush2.bf16.msra.mxu0 %v805
        %1003 = vmatprep.subr.bf16.mxu0 %v802
        %1004 = vmatpush2.bf16.msra.mxu0 %v801
        %1005 = vmatprep.mubr.bf16.mxu0 %v463
        %1006 = vmatmul.mubr.bf16.gmra.mxu0 %v462
        %v1007 = vpop.f32.mrf.mxu0
        %v1008 = vadd.f32 %v433, %v1007
        %v1009 = vpop.f32.mrf.mxu0
        %v1010 = vadd.f32 %v437, %v1009
        %v1011 = vpop.f32.mrf.mxu0
        %v1012 = vadd.f32 %v433, %v1011
        %v1013 = vpop.f32.mrf.mxu0
        %v1014 = vadd.f32 %v437, %v1013
        %1015 = vdwg.mxu0
        %1016 = vmatprep.subr.bf16.mxu0 %v862
        %1017 = vmatpush1.bf16.msra.mxu0 %v861
        %1018 = vmatprep.subr.bf16.mxu0 %v858
        %1019 = vmatpush1.bf16.msra.mxu0 %v857
        %1020 = vmatprep.subr.bf16.mxu0 %v854
        %1021 = vmatpush1.bf16.msra.mxu0 %v853
        %1022 = vmatprep.subr.bf16.mxu0 %v850
        %1023 = vmatpush1.bf16.msra.mxu0 %v849
        %1024 = vmatprep.subr.bf16.mxu0 %v846
        %1025 = vmatpush1.bf16.msra.mxu0 %v845
        %1026 = vmatprep.subr.bf16.mxu0 %v842
        %1027 = vmatpush1.bf16.msra.mxu0 %v841
        %1028 = vmatprep.subr.bf16.mxu0 %v838
        %1029 = vmatpush1.bf16.msra.mxu0 %v837
        %1030 = vmatprep.subr.bf16.mxu0 %v834
        %1031 = vmatpush1.bf16.msra.mxu0 %v833
        %1032 = vmatprep.subr.bf16.mxu0 0
        %1033 = vmatpush2.bf16.msra.mxu0 0
        %1034 = vmatprep.subr.bf16.mxu0 0
        %1035 = vmatpush2.bf16.msra.mxu0 0
        %1036 = vmatprep.subr.bf16.mxu0 0
        %1037 = vmatpush2.bf16.msra.mxu0 0
        %1038 = vmatprep.subr.bf16.mxu0 0
        %1039 = vmatpush2.bf16.msra.mxu0 0
        %1040 = vmatprep.subr.bf16.mxu0 0
        %1041 = vmatpush2.bf16.msra.mxu0 0
        %1042 = vmatprep.subr.bf16.mxu0 0
        %1043 = vmatpush2.bf16.msra.mxu0 0
        %1044 = vmatprep.subr.bf16.mxu0 0
        %1045 = vmatpush2.bf16.msra.mxu0 0
        %1046 = vmatprep.subr.bf16.mxu0 %v866
        %1047 = vmatpush2.bf16.msra.mxu0 %v865
        %1048 = vmatprep.mubr.bf16.mxu0 %v971
        %1049 = vmatmul.mubr.bf16.gmra.mxu0 %v464
        %v1050 = vpop.f32.mrf.mxu0
        %v1051 = vadd.f32 %v1008, %v1050
        %v1052 = vpop.f32.mrf.mxu0
        %v1053 = vadd.f32 %v1010, %v1052
        %v1054 = vpop.f32.mrf.mxu0
        %v1055 = vadd.f32 %v1012, %v1054
        %v1056 = vpop.f32.mrf.mxu0
        %v1057 = vadd.f32 %v1014, %v1056
        %1058 = vdwg.mxu0
        %1059 = vmatprep.subr.bf16.mxu0 %v800
        %1060 = vmatpush1.bf16.msra.mxu0 %v799
        %1061 = vmatprep.subr.bf16.mxu0 %v796
        %1062 = vmatpush1.bf16.msra.mxu0 %v795
        %1063 = vmatprep.subr.bf16.mxu0 %v792
        %1064 = vmatpush1.bf16.msra.mxu0 %v791
        %1065 = vmatprep.subr.bf16.mxu0 %v788
        %1066 = vmatpush1.bf16.msra.mxu0 %v787
        %1067 = vmatprep.subr.bf16.mxu0 %v784
        %1068 = vmatpush1.bf16.msra.mxu0 %v783
        %1069 = vmatprep.subr.bf16.mxu0 %v780
        %1070 = vmatpush1.bf16.msra.mxu0 %v779
        %1071 = vmatprep.subr.bf16.mxu0 %v776
        %1072 = vmatpush1.bf16.msra.mxu0 %v775
        %1073 = vmatprep.subr.bf16.mxu0 %v772
        %1074 = vmatpush1.bf16.msra.mxu0 %v771
        %1075 = vmatprep.subr.bf16.mxu0 %v832
        %1076 = vmatpush2.bf16.msra.mxu0 %v831
        %1077 = vmatprep.subr.bf16.mxu0 %v828
        %1078 = vmatpush2.bf16.msra.mxu0 %v827
        %1079 = vmatprep.subr.bf16.mxu0 %v824
        %1080 = vmatpush2.bf16.msra.mxu0 %v823
        %1081 = vmatprep.subr.bf16.mxu0 %v820
        %1082 = vmatpush2.bf16.msra.mxu0 %v819
        %1083 = vmatprep.subr.bf16.mxu0 %v816
        %1084 = vmatpush2.bf16.msra.mxu0 %v815
        %1085 = vmatprep.subr.bf16.mxu0 %v812
        %1086 = vmatpush2.bf16.msra.mxu0 %v811
        %1087 = vmatprep.subr.bf16.mxu0 %v808
        %1088 = vmatpush2.bf16.msra.mxu0 %v807
        %1089 = vmatprep.subr.bf16.mxu0 %v804
        %1090 = vmatpush2.bf16.msra.mxu0 %v803
        %1091 = vmatprep.mubr.bf16.mxu0 %v463
        %1092 = vmatmul.mubr.bf16.gmra.mxu0 %v462
        %v1093 = vpop.f32.mrf.mxu0
        %v1094 = vadd.f32 %v441, %v1093
        %v1095 = vpop.f32.mrf.mxu0
        %v1096 = vadd.f32 %v445, %v1095
        %v1097 = vpop.f32.mrf.mxu0
        %v1098 = vadd.f32 %v441, %v1097
        %v1099 = vpop.f32.mrf.mxu0
        %v1100 = vadd.f32 %v445, %v1099
        %1101 = vdwg.mxu0
        %1102 = vmatprep.subr.bf16.mxu0 %v864
        %1103 = vmatpush1.bf16.msra.mxu0 %v863
        %1104 = vmatprep.subr.bf16.mxu0 %v860
        %1105 = vmatpush1.bf16.msra.mxu0 %v859
        %1106 = vmatprep.subr.bf16.mxu0 %v856
        %1107 = vmatpush1.bf16.msra.mxu0 %v855
        %1108 = vmatprep.subr.bf16.mxu0 %v852
        %1109 = vmatpush1.bf16.msra.mxu0 %v851
        %1110 = vmatprep.subr.bf16.mxu0 %v848
        %1111 = vmatpush1.bf16.msra.mxu0 %v847
        %1112 = vmatprep.subr.bf16.mxu0 %v844
        %1113 = vmatpush1.bf16.msra.mxu0 %v843
        %1114 = vmatprep.subr.bf16.mxu0 %v840
        %1115 = vmatpush1.bf16.msra.mxu0 %v839
        %1116 = vmatprep.subr.bf16.mxu0 %v836
        %1117 = vmatpush1.bf16.msra.mxu0 %v835
        %1118 = vmatprep.subr.bf16.mxu0 0
        %1119 = vmatpush2.bf16.msra.mxu0 0
        %1120 = vmatprep.subr.bf16.mxu0 0
        %1121 = vmatpush2.bf16.msra.mxu0 0
        %1122 = vmatprep.subr.bf16.mxu0 0
        %1123 = vmatpush2.bf16.msra.mxu0 0
        %1124 = vmatprep.subr.bf16.mxu0 0
        %1125 = vmatpush2.bf16.msra.mxu0 0
        %1126 = vmatprep.subr.bf16.mxu0 0
        %1127 = vmatpush2.bf16.msra.mxu0 0
        %1128 = vmatprep.subr.bf16.mxu0 0
        %1129 = vmatpush2.bf16.msra.mxu0 0
        %1130 = vmatprep.subr.bf16.mxu0 0
        %1131 = vmatpush2.bf16.msra.mxu0 0
        %1132 = vmatprep.subr.bf16.mxu0 %v868
        %1133 = vmatpush2.bf16.msra.mxu0 %v867
        %1134 = vmatprep.mubr.bf16.mxu0 %v971
        %1135 = vmatmul.mubr.bf16.gmra.mxu0 %v464
        %v1136 = vpop.f32.mrf.mxu0
        %v1137 = vadd.f32 %v1094, %v1136
        %v1138 = vpop.f32.mrf.mxu0
        %v1139 = vadd.f32 %v1096, %v1138
        %v1140 = vpop.f32.mrf.mxu0
        %v1141 = vadd.f32 %v1098, %v1140
        %v1142 = vpop.f32.mrf.mxu0
        %v1143 = vadd.f32 %v1100, %v1142
        %1144 = vdwg.mxu0
        %v1145 = vmax.f32 %v1051, 0.0
        %v1146 = vmax.f32 %v1053, 0.0
        %v1147 = vmax.f32 %v1137, 0.0
        %v1148 = vmax.f32 %v1139, 0.0
        %v1149 = vmax.f32 %v1055, 0.0
        %v1150 = vmax.f32 %v1057, 0.0
        %v1151 = vmax.f32 %v1141, 0.0
        %v1152 = vmax.f32 %v1143, 0.0
        %v1153 = vpack.c.bf16 %v1149, %v1145
        %v1154 = vpack.c.bf16 %v1150, %v1146
        %v1155 = vpack.c.bf16 %v1151, %v1147
        %v1156 = vpack.c.bf16 %v1152, %v1148
        %v1157 = vld [vmem:[%s279] sm:$0xff]
        %v1158 = vld [vmem:[%s279 + $0x8] sm:$0xff]
        %v1159 = vld [vmem:[%s279 + $0x10] sm:$0xff]
        %v1160 = vld [vmem:[%s279 + $0x18] sm:$0xff]
        %v1161 = vld [vmem:[%s279 + $0x20] sm:$0xf]
        %v1162 = vld [vmem:[%s279 + $0x24] sm:$0xff]
        %v1163 = vld [vmem:[%s279 + $0x2c] sm:$0xff]
        %v1164 = vld [vmem:[%s279 + $0x34] sm:$0xff]
        %v1165 = vld [vmem:[%s279 + $0x3c] sm:$0xff]
        %v1166 = vld [vmem:[%s279 + $0x44] sm:$0xf]
        %v1167 = vld [vmem:[%s279 + $0x48] sm:$0xff]
        %v1168 = vld [vmem:[%s279 + $0x50] sm:$0xff]
        %v1169 = vld [vmem:[%s279 + $0x58] sm:$0xff]
        %v1170 = vld [vmem:[%s279 + $0x60] sm:$0xff]
        %v1171 = vld [vmem:[%s279 + $0x68] sm:$0xf]
        %v1172 = vld [vmem:[%s279 + $0x6c] sm:$0xff]
        %v1173 = vld [vmem:[%s279 + $0x74] sm:$0xff]
        %v1174 = vld [vmem:[%s279 + $0x7c] sm:$0xff]
        %v1175 = vld [vmem:[%s279 + $0x84] sm:$0xff]
        %v1176 = vld [vmem:[%s279 + $0x8c] sm:$0xf]
        %v1177 = vld [vmem:[%s279 + $0x90] sm:$0xff]
        %v1178 = vld [vmem:[%s279 + $0x98] sm:$0xff]
        %v1179 = vld [vmem:[%s279 + $0xa0] sm:$0xff]
        %v1180 = vld [vmem:[%s279 + $0xa8] sm:$0xff]
        %v1181 = vld [vmem:[%s279 + $0xb0] sm:$0xf]
        %v1182 = vld [vmem:[%s279 + $0xb4] sm:$0xff]
        %v1183 = vld [vmem:[%s279 + $0xbc] sm:$0xff]
        %v1184 = vld [vmem:[%s279 + $0xc4] sm:$0xff]
        %v1185 = vld [vmem:[%s279 + $0xcc] sm:$0xff]
        %v1186 = vld [vmem:[%s279 + $0xd4] sm:$0xf]
        %v1187 = vld [vmem:[%s279 + $0xd8] sm:$0xff]
        %v1188 = vld [vmem:[%s279 + $0xe0] sm:$0xff]
        %v1189 = vld [vmem:[%s279 + $0xe8] sm:$0xff]
        %v1190 = vld [vmem:[%s279 + $0xf0] sm:$0xff]
        %v1191 = vld [vmem:[%s279 + $0xf8] sm:$0xf]
        %v1192 = vld [vmem:[%s279 + $0xfc] sm:$0xff]
        %v1193 = vld [vmem:[%s279 + $0x104] sm:$0xff]
        %v1194 = vld [vmem:[%s279 + $0x10c] sm:$0xff]
        %v1195 = vld [vmem:[%s279 + $0x114] sm:$0xff]
        %v1196 = vld [vmem:[%s279 + $0x11c] sm:$0xf]
        %v1197 = vld [vmem:[%s279 + $0x120] sm:$0xff]
        %v1198 = vld [vmem:[%s279 + $0x128] sm:$0xff]
        %v1199 = vld [vmem:[%s279 + $0x130] sm:$0xff]
        %v1200 = vld [vmem:[%s279 + $0x138] sm:$0xff]
        %v1201 = vld [vmem:[%s279 + $0x140] sm:$0xf]
        %v1202 = vld [vmem:[%s279 + $0x144] sm:$0xff]
        %v1203 = vld [vmem:[%s279 + $0x14c] sm:$0xff]
        %v1204 = vld [vmem:[%s279 + $0x154] sm:$0xff]
        %v1205 = vld [vmem:[%s279 + $0x15c] sm:$0xff]
        %v1206 = vld [vmem:[%s279 + $0x164] sm:$0xf]
        %v1207 = vld [vmem:[%s279 + $0x168] sm:$0xff]
        %v1208 = vld [vmem:[%s279 + $0x170] sm:$0xff]
        %v1209 = vld [vmem:[%s279 + $0x178] sm:$0xff]
        %v1210 = vld [vmem:[%s279 + $0x180] sm:$0xff]
        %v1211 = vld [vmem:[%s279 + $0x188] sm:$0xf]
        %v1212 = vld [vmem:[%s279 + $0x18c] sm:$0xff]
        %v1213 = vld [vmem:[%s279 + $0x194] sm:$0xff]
        %v1214 = vld [vmem:[%s279 + $0x19c] sm:$0xff]
        %v1215 = vld [vmem:[%s279 + $0x1a4] sm:$0xff]
        %v1216 = vld [vmem:[%s279 + $0x1ac] sm:$0xf]
        %v1217 = vld [vmem:[%s279 + $0x1b0] sm:$0xff]
        %v1218 = vld [vmem:[%s279 + $0x1b8] sm:$0xff]
        %v1219 = vld [vmem:[%s279 + $0x1c0] sm:$0xff]
        %v1220 = vld [vmem:[%s279 + $0x1c8] sm:$0xff]
        %v1221 = vld [vmem:[%s279 + $0x1d0] sm:$0xf]
        %v1222 = vld [vmem:[%s279 + $0x1d4] sm:$0xff]
        %v1223 = vld [vmem:[%s279 + $0x1dc] sm:$0xff]
        %v1224 = vld [vmem:[%s279 + $0x1e4] sm:$0xff]
        %v1225 = vld [vmem:[%s279 + $0x1ec] sm:$0xff]
        %v1226 = vld [vmem:[%s279 + $0x1f4] sm:$0xf]
        %v1227 = vld [vmem:[%s279 + $0x1f8] sm:$0xff]
        %v1228 = vld [vmem:[%s279 + $0x200] sm:$0xff]
        %v1229 = vld [vmem:[%s279 + $0x208] sm:$0xff]
        %v1230 = vld [vmem:[%s279 + $0x210] sm:$0xff]
        %v1231 = vld [vmem:[%s279 + $0x218] sm:$0xf]
        %v1232 = vld [vmem:[%s279 + $0x21c] sm:$0xff]
        %v1233 = vld [vmem:[%s279 + $0x224] sm:$0xff]
        %v1234 = vld [vmem:[%s279 + $0x22c] sm:$0xff]
        %v1235 = vld [vmem:[%s279 + $0x234] sm:$0xff]
        %v1236 = vld [vmem:[%s279 + $0x23c] sm:$0xf]
        %v1237 = vld [vmem:[%s279 + $0x240] sm:$0xff]
        %v1238 = vld [vmem:[%s279 + $0x248] sm:$0xff]
        %v1239 = vld [vmem:[%s279 + $0x250] sm:$0xff]
        %v1240 = vld [vmem:[%s279 + $0x258] sm:$0xff]
        %v1241 = vld [vmem:[%s279 + $0x260] sm:$0xf]
        %v1242 = vld [vmem:[%s279 + $0x264] sm:$0xff]
        %v1243 = vld [vmem:[%s279 + $0x26c] sm:$0xff]
        %v1244 = vld [vmem:[%s279 + $0x274] sm:$0xff]
        %v1245 = vld [vmem:[%s279 + $0x27c] sm:$0xff]
        %v1246 = vld [vmem:[%s279 + $0x284] sm:$0xf]
        %v1247 = vld [vmem:[%s279 + $0x288] sm:$0xff]
        %v1248 = vld [vmem:[%s279 + $0x290] sm:$0xff]
        %v1249 = vld [vmem:[%s279 + $0x298] sm:$0xff]
        %v1250 = vld [vmem:[%s279 + $0x2a0] sm:$0xff]
        %v1251 = vld [vmem:[%s279 + $0x2a8] sm:$0xf]
        %v1252 = vld [vmem:[%s279 + $0x2ac] sm:$0xff]
        %v1253 = vld [vmem:[%s279 + $0x2b4] sm:$0xff]
        %v1254 = vld [vmem:[%s279 + $0x2bc] sm:$0xff]
        %v1255 = vld [vmem:[%s279 + $0x2c4] sm:$0xff]
        %v1256 = vld [vmem:[%s279 + $0x2cc] sm:$0xf]
        %v1257 = vld [vmem:[%s279 + $0x2d0] sm:$0xff]
        %v1258 = vld [vmem:[%s279 + $0x2d8] sm:$0xff]
        %v1259 = vld [vmem:[%s279 + $0x2e0] sm:$0xff]
        %v1260 = vld [vmem:[%s279 + $0x2e8] sm:$0xff]
        %v1261 = vld [vmem:[%s279 + $0x2f0] sm:$0xf]
        %v1262 = vld [vmem:[%s279 + $0x2f4] sm:$0xff]
        %v1263 = vld [vmem:[%s279 + $0x2fc] sm:$0xff]
        %v1264 = vld [vmem:[%s279 + $0x304] sm:$0xff]
        %v1265 = vld [vmem:[%s279 + $0x30c] sm:$0xff]
        %v1266 = vld [vmem:[%s279 + $0x314] sm:$0xf]
        %v1267 = vld [vmem:[%s279 + $0x318] sm:$0xff]
        %v1268 = vld [vmem:[%s279 + $0x320] sm:$0xff]
        %v1269 = vld [vmem:[%s279 + $0x328] sm:$0xff]
        %v1270 = vld [vmem:[%s279 + $0x330] sm:$0xff]
        %v1271 = vld [vmem:[%s279 + $0x338] sm:$0xf]
        %v1272 = vld [vmem:[%s279 + $0x33c] sm:$0xff]
        %v1273 = vld [vmem:[%s279 + $0x344] sm:$0xff]
        %v1274 = vld [vmem:[%s279 + $0x34c] sm:$0xff]
        %v1275 = vld [vmem:[%s279 + $0x354] sm:$0xff]
        %v1276 = vld [vmem:[%s279 + $0x35c] sm:$0xf]
        %v1277 = vld [vmem:[%s279 + $0x360] sm:$0xff]
        %v1278 = vld [vmem:[%s279 + $0x368] sm:$0xff]
        %v1279 = vld [vmem:[%s279 + $0x370] sm:$0xff]
        %v1280 = vld [vmem:[%s279 + $0x378] sm:$0xff]
        %v1281 = vld [vmem:[%s279 + $0x380] sm:$0xf]
        %v1282 = vld [vmem:[%s279 + $0x384] sm:$0xff]
        %v1283 = vld [vmem:[%s279 + $0x38c] sm:$0xff]
        %v1284 = vld [vmem:[%s279 + $0x394] sm:$0xff]
        %v1285 = vld [vmem:[%s279 + $0x39c] sm:$0xff]
        %v1286 = vld [vmem:[%s279 + $0x3a4] sm:$0xf]
        %v1287 = vld [vmem:[%s279 + $0x3a8] sm:$0xff]
        %v1288 = vld [vmem:[%s279 + $0x3b0] sm:$0xff]
        %v1289 = vld [vmem:[%s279 + $0x3b8] sm:$0xff]
        %v1290 = vld [vmem:[%s279 + $0x3c0] sm:$0xff]
        %v1291 = vld [vmem:[%s279 + $0x3c8] sm:$0xf]
        %v1292 = vld [vmem:[%s279 + $0x3cc] sm:$0xff]
        %v1293 = vld [vmem:[%s279 + $0x3d4] sm:$0xff]
        %v1294 = vld [vmem:[%s279 + $0x3dc] sm:$0xff]
        %v1295 = vld [vmem:[%s279 + $0x3e4] sm:$0xff]
        %v1296 = vld [vmem:[%s279 + $0x3ec] sm:$0xf]
        %v1297 = vld [vmem:[%s279 + $0x3f0] sm:$0xff]
        %v1298 = vld [vmem:[%s279 + $0x3f8] sm:$0xff]
        %v1299 = vld [vmem:[%s279 + $0x400] sm:$0xff]
        %v1300 = vld [vmem:[%s279 + $0x408] sm:$0xff]
        %v1301 = vld [vmem:[%s279 + $0x410] sm:$0xf]
        %v1302 = vld [vmem:[%s279 + $0x414] sm:$0xff]
        %v1303 = vld [vmem:[%s279 + $0x41c] sm:$0xff]
        %v1304 = vld [vmem:[%s279 + $0x424] sm:$0xff]
        %v1305 = vld [vmem:[%s279 + $0x42c] sm:$0xff]
        %v1306 = vld [vmem:[%s279 + $0x434] sm:$0xf]
        %v1307 = vld [vmem:[%s279 + $0x438] sm:$0xff]
        %v1308 = vld [vmem:[%s279 + $0x440] sm:$0xff]
        %v1309 = vld [vmem:[%s279 + $0x448] sm:$0xff]
        %v1310 = vld [vmem:[%s279 + $0x450] sm:$0xff]
        %v1311 = vld [vmem:[%s279 + $0x458] sm:$0xf]
        %v1312 = vld [vmem:[%s279 + $0x45c] sm:$0xff]
        %v1313 = vld [vmem:[%s279 + $0x464] sm:$0xff]
        %v1314 = vld [vmem:[%s279 + $0x46c] sm:$0xff]
        %v1315 = vld [vmem:[%s279 + $0x474] sm:$0xff]
        %v1316 = vld [vmem:[%s279 + $0x47c] sm:$0xf]
        %v1317 = vld [vmem:[%s279 + $0x480] sm:$0xff]
        %v1318 = vld [vmem:[%s279 + $0x488] sm:$0xff]
        %v1319 = vld [vmem:[%s279 + $0x490] sm:$0xff]
        %v1320 = vld [vmem:[%s279 + $0x498] sm:$0xff]
        %v1321 = vld [vmem:[%s279 + $0x4a0] sm:$0xf]
        %v1322 = vld [vmem:[%s279 + $0x4a4] sm:$0xff]
        %v1323 = vld [vmem:[%s279 + $0x4ac] sm:$0xff]
        %v1324 = vld [vmem:[%s279 + $0x4b4] sm:$0xff]
        %v1325 = vld [vmem:[%s279 + $0x4bc] sm:$0xff]
        %v1326 = vld [vmem:[%s279 + $0x4c4] sm:$0xf]
        %v1327 = vld [vmem:[%s279 + $0x4c8] sm:$0xff]
        %v1328 = vld [vmem:[%s279 + $0x4d0] sm:$0xff]
        %v1329 = vld [vmem:[%s279 + $0x4d8] sm:$0xff]
        %v1330 = vld [vmem:[%s279 + $0x4e0] sm:$0xff]
        %v1331 = vld [vmem:[%s279 + $0x4e8] sm:$0xf]
        %v1332 = vld [vmem:[%s279 + $0x4ec] sm:$0xff]
        %v1333 = vld [vmem:[%s279 + $0x4f4] sm:$0xff]
        %v1334 = vld [vmem:[%s279 + $0x4fc] sm:$0xff]
        %v1335 = vld [vmem:[%s279 + $0x504] sm:$0xff]
        %v1336 = vld [vmem:[%s279 + $0x50c] sm:$0xf]
        %v1337 = vld [vmem:[%s279 + $0x510] sm:$0xff]
        %v1338 = vld [vmem:[%s279 + $0x518] sm:$0xff]
        %v1339 = vld [vmem:[%s279 + $0x520] sm:$0xff]
        %v1340 = vld [vmem:[%s279 + $0x528] sm:$0xff]
        %v1341 = vld [vmem:[%s279 + $0x530] sm:$0xf]
        %v1342 = vld [vmem:[%s279 + $0x534] sm:$0xff]
        %v1343 = vld [vmem:[%s279 + $0x53c] sm:$0xff]
        %v1344 = vld [vmem:[%s279 + $0x544] sm:$0xff]
        %v1345 = vld [vmem:[%s279 + $0x54c] sm:$0xff]
        %v1346 = vld [vmem:[%s279 + $0x554] sm:$0xf]
        %v1347 = vld [vmem:[%s279 + $0x558] sm:$0xff]
        %v1348 = vld [vmem:[%s279 + $0x560] sm:$0xff]
        %v1349 = vld [vmem:[%s279 + $0x568] sm:$0xff]
        %v1350 = vld [vmem:[%s279 + $0x570] sm:$0xff]
        %v1351 = vld [vmem:[%s279 + $0x578] sm:$0xf]
        %v1352 = vld [vmem:[%s279 + $0x57c] sm:$0xff]
        %v1353 = vld [vmem:[%s279 + $0x584] sm:$0xff]
        %v1354 = vld [vmem:[%s279 + $0x58c] sm:$0xff]
        %v1355 = vld [vmem:[%s279 + $0x594] sm:$0xff]
        %v1356 = vld [vmem:[%s279 + $0x59c] sm:$0xf]
        %v1357 = vld [vmem:[%s279 + $0x5a0] sm:$0xff]
        %v1358 = vld [vmem:[%s279 + $0x5a8] sm:$0xff]
        %v1359 = vld [vmem:[%s279 + $0x5b0] sm:$0xff]
        %v1360 = vld [vmem:[%s279 + $0x5b8] sm:$0xff]
        %v1361 = vld [vmem:[%s279 + $0x5c0] sm:$0xf]
        %v1362 = vld [vmem:[%s279 + $0x5c4] sm:$0xff]
        %v1363 = vld [vmem:[%s279 + $0x5cc] sm:$0xff]
        %v1364 = vld [vmem:[%s279 + $0x5d4] sm:$0xff]
        %v1365 = vld [vmem:[%s279 + $0x5dc] sm:$0xff]
        %v1366 = vld [vmem:[%s279 + $0x5e4] sm:$0xf]
        %v1367 = vld [vmem:[%s279 + $0x5e8] sm:$0xff]
        %v1368 = vld [vmem:[%s279 + $0x5f0] sm:$0xff]
        %v1369 = vld [vmem:[%s279 + $0x5f8] sm:$0xff]
        %v1370 = vld [vmem:[%s279 + $0x600] sm:$0xff]
        %v1371 = vld [vmem:[%s279 + $0x608] sm:$0xf]
        %v1372 = vld [vmem:[%s279 + $0x60c] sm:$0xff]
        %v1373 = vld [vmem:[%s279 + $0x614] sm:$0xff]
        %v1374 = vld [vmem:[%s279 + $0x61c] sm:$0xff]
        %v1375 = vld [vmem:[%s279 + $0x624] sm:$0xff]
        %v1376 = vld [vmem:[%s279 + $0x62c] sm:$0xf]
        %v1377 = vld [vmem:[%s279 + $0x630] sm:$0xff]
        %v1378 = vld [vmem:[%s279 + $0x638] sm:$0xff]
        %v1379 = vld [vmem:[%s279 + $0x640] sm:$0xff]
        %v1380 = vld [vmem:[%s279 + $0x648] sm:$0xff]
        %v1381 = vld [vmem:[%s279 + $0x650] sm:$0xf]
        %v1382 = vld [vmem:[%s279 + $0x654] sm:$0xff]
        %v1383 = vld [vmem:[%s279 + $0x65c] sm:$0xff]
        %v1384 = vld [vmem:[%s279 + $0x664] sm:$0xff]
        %v1385 = vld [vmem:[%s279 + $0x66c] sm:$0xff]
        %v1386 = vld [vmem:[%s279 + $0x674] sm:$0xf]
        %v1387 = vld [vmem:[%s279 + $0x678] sm:$0xff]
        %v1388 = vld [vmem:[%s279 + $0x680] sm:$0xff]
        %v1389 = vld [vmem:[%s279 + $0x688] sm:$0xff]
        %v1390 = vld [vmem:[%s279 + $0x690] sm:$0xff]
        %v1391 = vld [vmem:[%s279 + $0x698] sm:$0xf]
        %v1392 = vld [vmem:[%s279 + $0x69c] sm:$0xff]
        %v1393 = vld [vmem:[%s279 + $0x6a4] sm:$0xff]
        %v1394 = vld [vmem:[%s279 + $0x6ac] sm:$0xff]
        %v1395 = vld [vmem:[%s279 + $0x6b4] sm:$0xff]
        %v1396 = vld [vmem:[%s279 + $0x6bc] sm:$0xf]
        %v1397 = vld [vmem:[%s279 + $0x6c0] sm:$0xff]
        %v1398 = vld [vmem:[%s279 + $0x6c8] sm:$0xff]
        %v1399 = vld [vmem:[%s279 + $0x6d0] sm:$0xff]
        %v1400 = vld [vmem:[%s279 + $0x6d8] sm:$0xff]
        %v1401 = vld [vmem:[%s279 + $0x6e0] sm:$0xf]
        %v1402 = vld [vmem:[%s279 + $0x6e4] sm:$0xff]
        %v1403 = vld [vmem:[%s279 + $0x6ec] sm:$0xff]
        %v1404 = vld [vmem:[%s279 + $0x6f4] sm:$0xff]
        %v1405 = vld [vmem:[%s279 + $0x6fc] sm:$0xff]
        %v1406 = vld [vmem:[%s279 + $0x704] sm:$0xf]
        %v1407 = vld [vmem:[%s288] sm:$0xff]
        %v1408 = vld [vmem:[%s288 + $0x8] sm:$0x1]
        %v1411 = vlaneseq
        %v1412 = vshrl.u32 %v1411, 7
        %v1413 = vsub.s32 0, %v1412
        %v1414 = vrot.slane %v1407, %v1413
        %v1415 = vlaneseq
        %v1416 = vshrl.u32 %v1415, 7
        %v1417 = vsub.s32 1, %v1416
        %v1418 = vrot.slane %v1407, %v1417
        %v1419 = vlaneseq
        %v1420 = vshrl.u32 %v1419, 7
        %v1421 = vsub.s32 2, %v1420
        %v1422 = vrot.slane %v1407, %v1421
        %v1423 = vlaneseq
        %v1424 = vshrl.u32 %v1423, 7
        %v1425 = vsub.s32 3, %v1424
        %v1426 = vrot.slane %v1407, %v1425
        %v1427 = vlaneseq
        %v1428 = vshrl.u32 %v1427, 7
        %v1429 = vsub.s32 4, %v1428
        %v1430 = vrot.slane %v1407, %v1429
        %v1431 = vlaneseq
        %v1432 = vshrl.u32 %v1431, 7
        %v1433 = vsub.s32 5, %v1432
        %v1434 = vrot.slane %v1407, %v1433
        %v1435 = vlaneseq
        %v1436 = vshrl.u32 %v1435, 7
        %v1437 = vsub.s32 6, %v1436
        %v1438 = vrot.slane %v1407, %v1437
        %v1439 = vlaneseq
        %v1440 = vshrl.u32 %v1439, 7
        %v1441 = vsub.s32 7, %v1440
        %v1442 = vrot.slane %v1407, %v1441
        %v1443 = vlaneseq
        %v1444 = vshrl.u32 %v1443, 7
        %v1445 = vsub.s32 0, %v1444
        %v1446 = vrot.slane %v1408, %v1445
        %v1706 = vunpack.c.l.b16 %v1157
        %v1707 = vunpack.c.h.b16 %v1157
        %v1708 = vunpack.c.l.b16 %v1158
        %v1709 = vunpack.c.h.b16 %v1158
        %v1710 = vunpack.c.l.b16 %v1159
        %v1711 = vunpack.c.h.b16 %v1159
        %v1712 = vunpack.c.l.b16 %v1160
        %v1713 = vunpack.c.h.b16 %v1160
        %v1714 = vunpack.c.l.b16 %v1161
        %v1715 = vunpack.c.l.b16 %v1162
        %v1716 = vunpack.c.h.b16 %v1162
        %v1717 = vunpack.c.l.b16 %v1163
        %v1718 = vunpack.c.h.b16 %v1163
        %v1719 = vunpack.c.l.b16 %v1164
        %v1720 = vunpack.c.h.b16 %v1164
        %v1721 = vunpack.c.l.b16 %v1165
        %v1722 = vunpack.c.h.b16 %v1165
        %v1723 = vunpack.c.l.b16 %v1166
        %v1724 = vunpack.c.l.b16 %v1167
        %v1725 = vunpack.c.h.b16 %v1167
        %v1726 = vunpack.c.l.b16 %v1168
        %v1727 = vunpack.c.h.b16 %v1168
        %v1728 = vunpack.c.l.b16 %v1169
        %v1729 = vunpack.c.h.b16 %v1169
        %v1730 = vunpack.c.l.b16 %v1170
        %v1731 = vunpack.c.h.b16 %v1170
        %v1732 = vunpack.c.l.b16 %v1171
        %v1733 = vunpack.c.l.b16 %v1172
        %v1734 = vunpack.c.h.b16 %v1172
        %v1735 = vunpack.c.l.b16 %v1173
        %v1736 = vunpack.c.h.b16 %v1173
        %v1737 = vunpack.c.l.b16 %v1174
        %v1738 = vunpack.c.h.b16 %v1174
        %v1739 = vunpack.c.l.b16 %v1175
        %v1740 = vunpack.c.h.b16 %v1175
        %v1741 = vunpack.c.l.b16 %v1176
        %v1742 = vunpack.c.l.b16 %v1177
        %v1743 = vunpack.c.h.b16 %v1177
        %v1744 = vunpack.c.l.b16 %v1178
        %v1745 = vunpack.c.h.b16 %v1178
        %v1746 = vunpack.c.l.b16 %v1179
        %v1747 = vunpack.c.h.b16 %v1179
        %v1748 = vunpack.c.l.b16 %v1180
        %v1749 = vunpack.c.h.b16 %v1180
        %v1750 = vunpack.c.l.b16 %v1181
        %v1751 = vunpack.c.l.b16 %v1182
        %v1752 = vunpack.c.h.b16 %v1182
        %v1753 = vunpack.c.l.b16 %v1183
        %v1754 = vunpack.c.h.b16 %v1183
        %v1755 = vunpack.c.l.b16 %v1184
        %v1756 = vunpack.c.h.b16 %v1184
        %v1757 = vunpack.c.l.b16 %v1185
        %v1758 = vunpack.c.h.b16 %v1185
        %v1759 = vunpack.c.l.b16 %v1186
        %v1760 = vunpack.c.l.b16 %v1187
        %v1761 = vunpack.c.h.b16 %v1187
        %v1762 = vunpack.c.l.b16 %v1188
        %v1763 = vunpack.c.h.b16 %v1188
        %v1764 = vunpack.c.l.b16 %v1189
        %v1765 = vunpack.c.h.b16 %v1189
        %v1766 = vunpack.c.l.b16 %v1190
        %v1767 = vunpack.c.h.b16 %v1190
        %v1768 = vunpack.c.l.b16 %v1191
        %v1769 = vunpack.c.l.b16 %v1192
        %v1770 = vunpack.c.h.b16 %v1192
        %v1771 = vunpack.c.l.b16 %v1193
        %v1772 = vunpack.c.h.b16 %v1193
        %v1773 = vunpack.c.l.b16 %v1194
        %v1774 = vunpack.c.h.b16 %v1194
        %v1775 = vunpack.c.l.b16 %v1195
        %v1776 = vunpack.c.h.b16 %v1195
        %v1777 = vunpack.c.l.b16 %v1196
        %v1778 = vunpack.c.l.b16 %v1197
        %v1779 = vunpack.c.h.b16 %v1197
        %v1780 = vunpack.c.l.b16 %v1198
        %v1781 = vunpack.c.h.b16 %v1198
        %v1782 = vunpack.c.l.b16 %v1199
        %v1783 = vunpack.c.h.b16 %v1199
        %v1784 = vunpack.c.l.b16 %v1200
        %v1785 = vunpack.c.h.b16 %v1200
        %v1786 = vunpack.c.l.b16 %v1201
        %v1787 = vunpack.c.l.b16 %v1202
        %v1788 = vunpack.c.h.b16 %v1202
        %v1789 = vunpack.c.l.b16 %v1203
        %v1790 = vunpack.c.h.b16 %v1203
        %v1791 = vunpack.c.l.b16 %v1204
        %v1792 = vunpack.c.h.b16 %v1204
        %v1793 = vunpack.c.l.b16 %v1205
        %v1794 = vunpack.c.h.b16 %v1205
        %v1795 = vunpack.c.l.b16 %v1206
        %v1796 = vunpack.c.l.b16 %v1207
        %v1797 = vunpack.c.h.b16 %v1207
        %v1798 = vunpack.c.l.b16 %v1208
        %v1799 = vunpack.c.h.b16 %v1208
        %v1800 = vunpack.c.l.b16 %v1209
        %v1801 = vunpack.c.h.b16 %v1209
        %v1802 = vunpack.c.l.b16 %v1210
        %v1803 = vunpack.c.h.b16 %v1210
        %v1804 = vunpack.c.l.b16 %v1211
        %v1805 = vunpack.c.l.b16 %v1212
        %v1806 = vunpack.c.h.b16 %v1212
        %v1807 = vunpack.c.l.b16 %v1213
        %v1808 = vunpack.c.h.b16 %v1213
        %v1809 = vunpack.c.l.b16 %v1214
        %v1810 = vunpack.c.h.b16 %v1214
        %v1811 = vunpack.c.l.b16 %v1215
        %v1812 = vunpack.c.h.b16 %v1215
        %v1813 = vunpack.c.l.b16 %v1216
        %v1814 = vunpack.c.l.b16 %v1217
        %v1815 = vunpack.c.h.b16 %v1217
        %v1816 = vunpack.c.l.b16 %v1218
        %v1817 = vunpack.c.h.b16 %v1218
        %v1818 = vunpack.c.l.b16 %v1219
        %v1819 = vunpack.c.h.b16 %v1219
        %v1820 = vunpack.c.l.b16 %v1220
        %v1821 = vunpack.c.h.b16 %v1220
        %v1822 = vunpack.c.l.b16 %v1221
        %v1823 = vunpack.c.l.b16 %v1222
        %v1824 = vunpack.c.h.b16 %v1222
        %v1825 = vunpack.c.l.b16 %v1223
        %v1826 = vunpack.c.h.b16 %v1223
        %v1827 = vunpack.c.l.b16 %v1224
        %v1828 = vunpack.c.h.b16 %v1224
        %v1829 = vunpack.c.l.b16 %v1225
        %v1830 = vunpack.c.h.b16 %v1225
        %v1831 = vunpack.c.l.b16 %v1226
        %v1832 = vunpack.c.l.b16 %v1227
        %v1833 = vunpack.c.h.b16 %v1227
        %v1834 = vunpack.c.l.b16 %v1228
        %v1835 = vunpack.c.h.b16 %v1228
        %v1836 = vunpack.c.l.b16 %v1229
        %v1837 = vunpack.c.h.b16 %v1229
        %v1838 = vunpack.c.l.b16 %v1230
        %v1839 = vunpack.c.h.b16 %v1230
        %v1840 = vunpack.c.l.b16 %v1231
        %v1841 = vunpack.c.l.b16 %v1232
        %v1842 = vunpack.c.h.b16 %v1232
        %v1843 = vunpack.c.l.b16 %v1233
        %v1844 = vunpack.c.h.b16 %v1233
        %v1845 = vunpack.c.l.b16 %v1234
        %v1846 = vunpack.c.h.b16 %v1234
        %v1847 = vunpack.c.l.b16 %v1235
        %v1848 = vunpack.c.h.b16 %v1235
        %v1849 = vunpack.c.l.b16 %v1236
        %v1850 = vunpack.c.l.b16 %v1237
        %v1851 = vunpack.c.h.b16 %v1237
        %v1852 = vunpack.c.l.b16 %v1238
        %v1853 = vunpack.c.h.b16 %v1238
        %v1854 = vunpack.c.l.b16 %v1239
        %v1855 = vunpack.c.h.b16 %v1239
        %v1856 = vunpack.c.l.b16 %v1240
        %v1857 = vunpack.c.h.b16 %v1240
        %v1858 = vunpack.c.l.b16 %v1241
        %v1859 = vunpack.c.l.b16 %v1242
        %v1860 = vunpack.c.h.b16 %v1242
        %v1861 = vunpack.c.l.b16 %v1243
        %v1862 = vunpack.c.h.b16 %v1243
        %v1863 = vunpack.c.l.b16 %v1244
        %v1864 = vunpack.c.h.b16 %v1244
        %v1865 = vunpack.c.l.b16 %v1245
        %v1866 = vunpack.c.h.b16 %v1245
        %v1867 = vunpack.c.l.b16 %v1246
        %v1868 = vunpack.c.l.b16 %v1247
        %v1869 = vunpack.c.h.b16 %v1247
        %v1870 = vunpack.c.l.b16 %v1248
        %v1871 = vunpack.c.h.b16 %v1248
        %v1872 = vunpack.c.l.b16 %v1249
        %v1873 = vunpack.c.h.b16 %v1249
        %v1874 = vunpack.c.l.b16 %v1250
        %v1875 = vunpack.c.h.b16 %v1250
        %v1876 = vunpack.c.l.b16 %v1251
        %v1877 = vunpack.c.l.b16 %v1252
        %v1878 = vunpack.c.h.b16 %v1252
        %v1879 = vunpack.c.l.b16 %v1253
        %v1880 = vunpack.c.h.b16 %v1253
        %v1881 = vunpack.c.l.b16 %v1254
        %v1882 = vunpack.c.h.b16 %v1254
        %v1883 = vunpack.c.l.b16 %v1255
        %v1884 = vunpack.c.h.b16 %v1255
        %v1885 = vunpack.c.l.b16 %v1256
        %v1886 = vunpack.c.l.b16 %v1257
        %v1887 = vunpack.c.h.b16 %v1257
        %v1888 = vunpack.c.l.b16 %v1258
        %v1889 = vunpack.c.h.b16 %v1258
        %v1890 = vunpack.c.l.b16 %v1259
        %v1891 = vunpack.c.h.b16 %v1259
        %v1892 = vunpack.c.l.b16 %v1260
        %v1893 = vunpack.c.h.b16 %v1260
        %v1894 = vunpack.c.l.b16 %v1261
        %v1895 = vunpack.c.l.b16 %v1262
        %v1896 = vunpack.c.h.b16 %v1262
        %v1897 = vunpack.c.l.b16 %v1263
        %v1898 = vunpack.c.h.b16 %v1263
        %v1899 = vunpack.c.l.b16 %v1264
        %v1900 = vunpack.c.h.b16 %v1264
        %v1901 = vunpack.c.l.b16 %v1265
        %v1902 = vunpack.c.h.b16 %v1265
        %v1903 = vunpack.c.l.b16 %v1266
        %v1904 = vunpack.c.l.b16 %v1267
        %v1905 = vunpack.c.h.b16 %v1267
        %v1906 = vunpack.c.l.b16 %v1268
        %v1907 = vunpack.c.h.b16 %v1268
        %v1908 = vunpack.c.l.b16 %v1269
        %v1909 = vunpack.c.h.b16 %v1269
        %v1910 = vunpack.c.l.b16 %v1270
        %v1911 = vunpack.c.h.b16 %v1270
        %v1912 = vunpack.c.l.b16 %v1271
        %v1913 = vunpack.c.l.b16 %v1272
        %v1914 = vunpack.c.h.b16 %v1272
        %v1915 = vunpack.c.l.b16 %v1273
        %v1916 = vunpack.c.h.b16 %v1273
        %v1917 = vunpack.c.l.b16 %v1274
        %v1918 = vunpack.c.h.b16 %v1274
        %v1919 = vunpack.c.l.b16 %v1275
        %v1920 = vunpack.c.h.b16 %v1275
        %v1921 = vunpack.c.l.b16 %v1276
        %v1922 = vunpack.c.l.b16 %v1277
        %v1923 = vunpack.c.h.b16 %v1277
        %v1924 = vunpack.c.l.b16 %v1278
        %v1925 = vunpack.c.h.b16 %v1278
        %v1926 = vunpack.c.l.b16 %v1279
        %v1927 = vunpack.c.h.b16 %v1279
        %v1928 = vunpack.c.l.b16 %v1280
        %v1929 = vunpack.c.h.b16 %v1280
        %v1930 = vunpack.c.l.b16 %v1281
        %v1931 = vunpack.c.l.b16 %v1282
        %v1932 = vunpack.c.h.b16 %v1282
        %v1933 = vunpack.c.l.b16 %v1283
        %v1934 = vunpack.c.h.b16 %v1283
        %v1935 = vunpack.c.l.b16 %v1284
        %v1936 = vunpack.c.h.b16 %v1284
        %v1937 = vunpack.c.l.b16 %v1285
        %v1938 = vunpack.c.h.b16 %v1285
        %v1939 = vunpack.c.l.b16 %v1286
        %v1940 = vunpack.c.l.b16 %v1287
        %v1941 = vunpack.c.h.b16 %v1287
        %v1942 = vunpack.c.l.b16 %v1288
        %v1943 = vunpack.c.h.b16 %v1288
        %v1944 = vunpack.c.l.b16 %v1289
        %v1945 = vunpack.c.h.b16 %v1289
        %v1946 = vunpack.c.l.b16 %v1290
        %v1947 = vunpack.c.h.b16 %v1290
        %v1948 = vunpack.c.l.b16 %v1291
        %v1949 = vunpack.c.l.b16 %v1292
        %v1950 = vunpack.c.h.b16 %v1292
        %v1951 = vunpack.c.l.b16 %v1293
        %v1952 = vunpack.c.h.b16 %v1293
        %v1953 = vunpack.c.l.b16 %v1294
        %v1954 = vunpack.c.h.b16 %v1294
        %v1955 = vunpack.c.l.b16 %v1295
        %v1956 = vunpack.c.h.b16 %v1295
        %v1957 = vunpack.c.l.b16 %v1296
        %v1958 = vunpack.c.l.b16 %v1297
        %v1959 = vunpack.c.h.b16 %v1297
        %v1960 = vunpack.c.l.b16 %v1298
        %v1961 = vunpack.c.h.b16 %v1298
        %v1962 = vunpack.c.l.b16 %v1299
        %v1963 = vunpack.c.h.b16 %v1299
        %v1964 = vunpack.c.l.b16 %v1300
        %v1965 = vunpack.c.h.b16 %v1300
        %v1966 = vunpack.c.l.b16 %v1301
        %v1967 = vunpack.c.l.b16 %v1302
        %v1968 = vunpack.c.h.b16 %v1302
        %v1969 = vunpack.c.l.b16 %v1303
        %v1970 = vunpack.c.h.b16 %v1303
        %v1971 = vunpack.c.l.b16 %v1304
        %v1972 = vunpack.c.h.b16 %v1304
        %v1973 = vunpack.c.l.b16 %v1305
        %v1974 = vunpack.c.h.b16 %v1305
        %v1975 = vunpack.c.l.b16 %v1306
        %v1976 = vunpack.c.l.b16 %v1307
        %v1977 = vunpack.c.h.b16 %v1307
        %v1978 = vunpack.c.l.b16 %v1308
        %v1979 = vunpack.c.h.b16 %v1308
        %v1980 = vunpack.c.l.b16 %v1309
        %v1981 = vunpack.c.h.b16 %v1309
        %v1982 = vunpack.c.l.b16 %v1310
        %v1983 = vunpack.c.h.b16 %v1310
        %v1984 = vunpack.c.l.b16 %v1311
        %v1985 = vunpack.c.l.b16 %v1312
        %v1986 = vunpack.c.h.b16 %v1312
        %v1987 = vunpack.c.l.b16 %v1313
        %v1988 = vunpack.c.h.b16 %v1313
        %v1989 = vunpack.c.l.b16 %v1314
        %v1990 = vunpack.c.h.b16 %v1314
        %v1991 = vunpack.c.l.b16 %v1315
        %v1992 = vunpack.c.h.b16 %v1315
        %v1993 = vunpack.c.l.b16 %v1316
        %v1994 = vunpack.c.l.b16 %v1317
        %v1995 = vunpack.c.h.b16 %v1317
        %v1996 = vunpack.c.l.b16 %v1318
        %v1997 = vunpack.c.h.b16 %v1318
        %v1998 = vunpack.c.l.b16 %v1319
        %v1999 = vunpack.c.h.b16 %v1319
        %v2000 = vunpack.c.l.b16 %v1320
        %v2001 = vunpack.c.h.b16 %v1320
        %v2002 = vunpack.c.l.b16 %v1321
        %v2003 = vunpack.c.l.b16 %v1322
        %v2004 = vunpack.c.h.b16 %v1322
        %v2005 = vunpack.c.l.b16 %v1323
        %v2006 = vunpack.c.h.b16 %v1323
        %v2007 = vunpack.c.l.b16 %v1324
        %v2008 = vunpack.c.h.b16 %v1324
        %v2009 = vunpack.c.l.b16 %v1325
        %v2010 = vunpack.c.h.b16 %v1325
        %v2011 = vunpack.c.l.b16 %v1326
        %v2012 = vunpack.c.l.b16 %v1327
        %v2013 = vunpack.c.h.b16 %v1327
        %v2014 = vunpack.c.l.b16 %v1328
        %v2015 = vunpack.c.h.b16 %v1328
        %v2016 = vunpack.c.l.b16 %v1329
        %v2017 = vunpack.c.h.b16 %v1329
        %v2018 = vunpack.c.l.b16 %v1330
        %v2019 = vunpack.c.h.b16 %v1330
        %v2020 = vunpack.c.l.b16 %v1331
        %v2021 = vunpack.c.l.b16 %v1332
        %v2022 = vunpack.c.h.b16 %v1332
        %v2023 = vunpack.c.l.b16 %v1333
        %v2024 = vunpack.c.h.b16 %v1333
        %v2025 = vunpack.c.l.b16 %v1334
        %v2026 = vunpack.c.h.b16 %v1334
        %v2027 = vunpack.c.l.b16 %v1335
        %v2028 = vunpack.c.h.b16 %v1335
        %v2029 = vunpack.c.l.b16 %v1336
        %v2030 = vunpack.c.l.b16 %v1337
        %v2031 = vunpack.c.h.b16 %v1337
        %v2032 = vunpack.c.l.b16 %v1338
        %v2033 = vunpack.c.h.b16 %v1338
        %v2034 = vunpack.c.l.b16 %v1339
        %v2035 = vunpack.c.h.b16 %v1339
        %v2036 = vunpack.c.l.b16 %v1340
        %v2037 = vunpack.c.h.b16 %v1340
        %v2038 = vunpack.c.l.b16 %v1341
        %v2039 = vunpack.c.l.b16 %v1342
        %v2040 = vunpack.c.h.b16 %v1342
        %v2041 = vunpack.c.l.b16 %v1343
        %v2042 = vunpack.c.h.b16 %v1343
        %v2043 = vunpack.c.l.b16 %v1344
        %v2044 = vunpack.c.h.b16 %v1344
        %v2045 = vunpack.c.l.b16 %v1345
        %v2046 = vunpack.c.h.b16 %v1345
        %v2047 = vunpack.c.l.b16 %v1346
        %v2048 = vunpack.c.l.b16 %v1347
        %v2049 = vunpack.c.h.b16 %v1347
        %v2050 = vunpack.c.l.b16 %v1348
        %v2051 = vunpack.c.h.b16 %v1348
        %v2052 = vunpack.c.l.b16 %v1349
        %v2053 = vunpack.c.h.b16 %v1349
        %v2054 = vunpack.c.l.b16 %v1350
        %v2055 = vunpack.c.h.b16 %v1350
        %v2056 = vunpack.c.l.b16 %v1351
        %v2057 = vunpack.c.l.b16 %v1352
        %v2058 = vunpack.c.h.b16 %v1352
        %v2059 = vunpack.c.l.b16 %v1353
        %v2060 = vunpack.c.h.b16 %v1353
        %v2061 = vunpack.c.l.b16 %v1354
        %v2062 = vunpack.c.h.b16 %v1354
        %v2063 = vunpack.c.l.b16 %v1355
        %v2064 = vunpack.c.h.b16 %v1355
        %v2065 = vunpack.c.l.b16 %v1356
        %v2066 = vunpack.c.l.b16 %v1357
        %v2067 = vunpack.c.h.b16 %v1357
        %v2068 = vunpack.c.l.b16 %v1358
        %v2069 = vunpack.c.h.b16 %v1358
        %v2070 = vunpack.c.l.b16 %v1359
        %v2071 = vunpack.c.h.b16 %v1359
        %v2072 = vunpack.c.l.b16 %v1360
        %v2073 = vunpack.c.h.b16 %v1360
        %v2074 = vunpack.c.l.b16 %v1361
        %v2075 = vunpack.c.l.b16 %v1362
        %v2076 = vunpack.c.h.b16 %v1362
        %v2077 = vunpack.c.l.b16 %v1363
        %v2078 = vunpack.c.h.b16 %v1363
        %v2079 = vunpack.c.l.b16 %v1364
        %v2080 = vunpack.c.h.b16 %v1364
        %v2081 = vunpack.c.l.b16 %v1365
        %v2082 = vunpack.c.h.b16 %v1365
        %v2083 = vunpack.c.l.b16 %v1366
        %v2084 = vunpack.c.l.b16 %v1367
        %v2085 = vunpack.c.h.b16 %v1367
        %v2086 = vunpack.c.l.b16 %v1368
        %v2087 = vunpack.c.h.b16 %v1368
        %v2088 = vunpack.c.l.b16 %v1369
        %v2089 = vunpack.c.h.b16 %v1369
        %v2090 = vunpack.c.l.b16 %v1370
        %v2091 = vunpack.c.h.b16 %v1370
        %v2092 = vunpack.c.l.b16 %v1371
        %v2093 = vunpack.c.l.b16 %v1372
        %v2094 = vunpack.c.h.b16 %v1372
        %v2095 = vunpack.c.l.b16 %v1373
        %v2096 = vunpack.c.h.b16 %v1373
        %v2097 = vunpack.c.l.b16 %v1374
        %v2098 = vunpack.c.h.b16 %v1374
        %v2099 = vunpack.c.l.b16 %v1375
        %v2100 = vunpack.c.h.b16 %v1375
        %v2101 = vunpack.c.l.b16 %v1376
        %v2102 = vunpack.c.l.b16 %v1377
        %v2103 = vunpack.c.h.b16 %v1377
        %v2104 = vunpack.c.l.b16 %v1378
        %v2105 = vunpack.c.h.b16 %v1378
        %v2106 = vunpack.c.l.b16 %v1379
        %v2107 = vunpack.c.h.b16 %v1379
        %v2108 = vunpack.c.l.b16 %v1380
        %v2109 = vunpack.c.h.b16 %v1380
        %v2110 = vunpack.c.l.b16 %v1381
        %v2111 = vunpack.c.l.b16 %v1382
        %v2112 = vunpack.c.h.b16 %v1382
        %v2113 = vunpack.c.l.b16 %v1383
        %v2114 = vunpack.c.h.b16 %v1383
        %v2115 = vunpack.c.l.b16 %v1384
        %v2116 = vunpack.c.h.b16 %v1384
        %v2117 = vunpack.c.l.b16 %v1385
        %v2118 = vunpack.c.h.b16 %v1385
        %v2119 = vunpack.c.l.b16 %v1386
        %v2120 = vunpack.c.l.b16 %v1387
        %v2121 = vunpack.c.h.b16 %v1387
        %v2122 = vunpack.c.l.b16 %v1388
        %v2123 = vunpack.c.h.b16 %v1388
        %v2124 = vunpack.c.l.b16 %v1389
        %v2125 = vunpack.c.h.b16 %v1389
        %v2126 = vunpack.c.l.b16 %v1390
        %v2127 = vunpack.c.h.b16 %v1390
        %v2128 = vunpack.c.l.b16 %v1391
        %v2129 = vunpack.c.l.b16 %v1392
        %v2130 = vunpack.c.h.b16 %v1392
        %v2131 = vunpack.c.l.b16 %v1393
        %v2132 = vunpack.c.h.b16 %v1393
        %v2133 = vunpack.c.l.b16 %v1394
        %v2134 = vunpack.c.h.b16 %v1394
        %v2135 = vunpack.c.l.b16 %v1395
        %v2136 = vunpack.c.h.b16 %v1395
        %v2137 = vunpack.c.l.b16 %v1396
        %v2138 = vunpack.c.l.b16 %v1397
        %v2139 = vunpack.c.h.b16 %v1397
        %v2140 = vunpack.c.l.b16 %v1398
        %v2141 = vunpack.c.h.b16 %v1398
        %v2142 = vunpack.c.l.b16 %v1399
        %v2143 = vunpack.c.h.b16 %v1399
        %v2144 = vunpack.c.l.b16 %v1400
        %v2145 = vunpack.c.h.b16 %v1400
        %v2146 = vunpack.c.l.b16 %v1401
        %v2147 = vunpack.c.l.b16 %v1402
        %v2148 = vunpack.c.h.b16 %v1402
        %v2149 = vunpack.c.l.b16 %v1403
        %v2150 = vunpack.c.h.b16 %v1403
        %v2151 = vunpack.c.l.b16 %v1404
        %v2152 = vunpack.c.h.b16 %v1404
        %v2153 = vunpack.c.l.b16 %v1405
        %v2154 = vunpack.c.h.b16 %v1405
        %v2155 = vunpack.c.l.b16 %v1406
        %v2156 = vpack.c.b16 %v1715, %v1706
        %v2157 = vpack.c.b16 %v1716, %v1707
        %v2158 = vpack.c.b16 %v1717, %v1708
        %v2159 = vpack.c.b16 %v1718, %v1709
        %v2160 = vpack.c.b16 %v1719, %v1710
        %v2161 = vpack.c.b16 %v1720, %v1711
        %v2162 = vpack.c.b16 %v1721, %v1712
        %v2163 = vpack.c.b16 %v1722, %v1713
        %v2164 = vpack.c.b16 %v1723, %v1714
        %v2165 = vpack.c.b16 %v1733, %v1724
        %v2166 = vpack.c.b16 %v1734, %v1725
        %v2167 = vpack.c.b16 %v1735, %v1726
        %v2168 = vpack.c.b16 %v1736, %v1727
        %v2169 = vpack.c.b16 %v1737, %v1728
        %v2170 = vpack.c.b16 %v1738, %v1729
        %v2171 = vpack.c.b16 %v1739, %v1730
        %v2172 = vpack.c.b16 %v1740, %v1731
        %v2173 = vpack.c.b16 %v1741, %v1732
        %v2174 = vpack.c.b16 %v1751, %v1742
        %v2175 = vpack.c.b16 %v1752, %v1743
        %v2176 = vpack.c.b16 %v1753, %v1744
        %v2177 = vpack.c.b16 %v1754, %v1745
        %v2178 = vpack.c.b16 %v1755, %v1746
        %v2179 = vpack.c.b16 %v1756, %v1747
        %v2180 = vpack.c.b16 %v1757, %v1748
        %v2181 = vpack.c.b16 %v1758, %v1749
        %v2182 = vpack.c.b16 %v1759, %v1750
        %v2183 = vpack.c.b16 %v1769, %v1760
        %v2184 = vpack.c.b16 %v1770, %v1761
        %v2185 = vpack.c.b16 %v1771, %v1762
        %v2186 = vpack.c.b16 %v1772, %v1763
        %v2187 = vpack.c.b16 %v1773, %v1764
        %v2188 = vpack.c.b16 %v1774, %v1765
        %v2189 = vpack.c.b16 %v1775, %v1766
        %v2190 = vpack.c.b16 %v1776, %v1767
        %v2191 = vpack.c.b16 %v1777, %v1768
        %v2192 = vpack.c.b16 %v1787, %v1778
        %v2193 = vpack.c.b16 %v1788, %v1779
        %v2194 = vpack.c.b16 %v1789, %v1780
        %v2195 = vpack.c.b16 %v1790, %v1781
        %v2196 = vpack.c.b16 %v1791, %v1782
        %v2197 = vpack.c.b16 %v1792, %v1783
        %v2198 = vpack.c.b16 %v1793, %v1784
        %v2199 = vpack.c.b16 %v1794, %v1785
        %v2200 = vpack.c.b16 %v1795, %v1786
        %v2201 = vpack.c.b16 %v1805, %v1796
        %v2202 = vpack.c.b16 %v1806, %v1797
        %v2203 = vpack.c.b16 %v1807, %v1798
        %v2204 = vpack.c.b16 %v1808, %v1799
        %v2205 = vpack.c.b16 %v1809, %v1800
        %v2206 = vpack.c.b16 %v1810, %v1801
        %v2207 = vpack.c.b16 %v1811, %v1802
        %v2208 = vpack.c.b16 %v1812, %v1803
        %v2209 = vpack.c.b16 %v1813, %v1804
        %v2210 = vpack.c.b16 %v1823, %v1814
        %v2211 = vpack.c.b16 %v1824, %v1815
        %v2212 = vpack.c.b16 %v1825, %v1816
        %v2213 = vpack.c.b16 %v1826, %v1817
        %v2214 = vpack.c.b16 %v1827, %v1818
        %v2215 = vpack.c.b16 %v1828, %v1819
        %v2216 = vpack.c.b16 %v1829, %v1820
        %v2217 = vpack.c.b16 %v1830, %v1821
        %v2218 = vpack.c.b16 %v1831, %v1822
        %v2219 = vpack.c.b16 %v1841, %v1832
        %v2220 = vpack.c.b16 %v1842, %v1833
        %v2221 = vpack.c.b16 %v1843, %v1834
        %v2222 = vpack.c.b16 %v1844, %v1835
        %v2223 = vpack.c.b16 %v1845, %v1836
        %v2224 = vpack.c.b16 %v1846, %v1837
        %v2225 = vpack.c.b16 %v1847, %v1838
        %v2226 = vpack.c.b16 %v1848, %v1839
        %v2227 = vpack.c.b16 %v1849, %v1840
        %v2228 = vpack.c.b16 %v1859, %v1850
        %v2229 = vpack.c.b16 %v1860, %v1851
        %v2230 = vpack.c.b16 %v1861, %v1852
        %v2231 = vpack.c.b16 %v1862, %v1853
        %v2232 = vpack.c.b16 %v1863, %v1854
        %v2233 = vpack.c.b16 %v1864, %v1855
        %v2234 = vpack.c.b16 %v1865, %v1856
        %v2235 = vpack.c.b16 %v1866, %v1857
        %v2236 = vpack.c.b16 %v1867, %v1858
        %v2237 = vpack.c.b16 %v1877, %v1868
        %v2238 = vpack.c.b16 %v1878, %v1869
        %v2239 = vpack.c.b16 %v1879, %v1870
        %v2240 = vpack.c.b16 %v1880, %v1871
        %v2241 = vpack.c.b16 %v1881, %v1872
        %v2242 = vpack.c.b16 %v1882, %v1873
        %v2243 = vpack.c.b16 %v1883, %v1874
        %v2244 = vpack.c.b16 %v1884, %v1875
        %v2245 = vpack.c.b16 %v1885, %v1876
        %v2246 = vpack.c.b16 %v1895, %v1886
        %v2247 = vpack.c.b16 %v1896, %v1887
        %v2248 = vpack.c.b16 %v1897, %v1888
        %v2249 = vpack.c.b16 %v1898, %v1889
        %v2250 = vpack.c.b16 %v1899, %v1890
        %v2251 = vpack.c.b16 %v1900, %v1891
        %v2252 = vpack.c.b16 %v1901, %v1892
        %v2253 = vpack.c.b16 %v1902, %v1893
        %v2254 = vpack.c.b16 %v1903, %v1894
        %v2255 = vpack.c.b16 %v1913, %v1904
        %v2256 = vpack.c.b16 %v1914, %v1905
        %v2257 = vpack.c.b16 %v1915, %v1906
        %v2258 = vpack.c.b16 %v1916, %v1907
        %v2259 = vpack.c.b16 %v1917, %v1908
        %v2260 = vpack.c.b16 %v1918, %v1909
        %v2261 = vpack.c.b16 %v1919, %v1910
        %v2262 = vpack.c.b16 %v1920, %v1911
        %v2263 = vpack.c.b16 %v1921, %v1912
        %v2264 = vpack.c.b16 %v1931, %v1922
        %v2265 = vpack.c.b16 %v1932, %v1923
        %v2266 = vpack.c.b16 %v1933, %v1924
        %v2267 = vpack.c.b16 %v1934, %v1925
        %v2268 = vpack.c.b16 %v1935, %v1926
        %v2269 = vpack.c.b16 %v1936, %v1927
        %v2270 = vpack.c.b16 %v1937, %v1928
        %v2271 = vpack.c.b16 %v1938, %v1929
        %v2272 = vpack.c.b16 %v1939, %v1930
        %v2273 = vpack.c.b16 %v1949, %v1940
        %v2274 = vpack.c.b16 %v1950, %v1941
        %v2275 = vpack.c.b16 %v1951, %v1942
        %v2276 = vpack.c.b16 %v1952, %v1943
        %v2277 = vpack.c.b16 %v1953, %v1944
        %v2278 = vpack.c.b16 %v1954, %v1945
        %v2279 = vpack.c.b16 %v1955, %v1946
        %v2280 = vpack.c.b16 %v1956, %v1947
        %v2281 = vpack.c.b16 %v1957, %v1948
        %v2282 = vpack.c.b16 %v1967, %v1958
        %v2283 = vpack.c.b16 %v1968, %v1959
        %v2284 = vpack.c.b16 %v1969, %v1960
        %v2285 = vpack.c.b16 %v1970, %v1961
        %v2286 = vpack.c.b16 %v1971, %v1962
        %v2287 = vpack.c.b16 %v1972, %v1963
        %v2288 = vpack.c.b16 %v1973, %v1964
        %v2289 = vpack.c.b16 %v1974, %v1965
        %v2290 = vpack.c.b16 %v1975, %v1966
        %v2291 = vpack.c.b16 %v1985, %v1976
        %v2292 = vpack.c.b16 %v1986, %v1977
        %v2293 = vpack.c.b16 %v1987, %v1978
        %v2294 = vpack.c.b16 %v1988, %v1979
        %v2295 = vpack.c.b16 %v1989, %v1980
        %v2296 = vpack.c.b16 %v1990, %v1981
        %v2297 = vpack.c.b16 %v1991, %v1982
        %v2298 = vpack.c.b16 %v1992, %v1983
        %v2299 = vpack.c.b16 %v1993, %v1984
        %v2300 = vpack.c.b16 %v2003, %v1994
        %v2301 = vpack.c.b16 %v2004, %v1995
        %v2302 = vpack.c.b16 %v2005, %v1996
        %v2303 = vpack.c.b16 %v2006, %v1997
        %v2304 = vpack.c.b16 %v2007, %v1998
        %v2305 = vpack.c.b16 %v2008, %v1999
        %v2306 = vpack.c.b16 %v2009, %v2000
        %v2307 = vpack.c.b16 %v2010, %v2001
        %v2308 = vpack.c.b16 %v2011, %v2002
        %v2309 = vpack.c.b16 %v2021, %v2012
        %v2310 = vpack.c.b16 %v2022, %v2013
        %v2311 = vpack.c.b16 %v2023, %v2014
        %v2312 = vpack.c.b16 %v2024, %v2015
        %v2313 = vpack.c.b16 %v2025, %v2016
        %v2314 = vpack.c.b16 %v2026, %v2017
        %v2315 = vpack.c.b16 %v2027, %v2018
        %v2316 = vpack.c.b16 %v2028, %v2019
        %v2317 = vpack.c.b16 %v2029, %v2020
        %v2318 = vpack.c.b16 %v2039, %v2030
        %v2319 = vpack.c.b16 %v2040, %v2031
        %v2320 = vpack.c.b16 %v2041, %v2032
        %v2321 = vpack.c.b16 %v2042, %v2033
        %v2322 = vpack.c.b16 %v2043, %v2034
        %v2323 = vpack.c.b16 %v2044, %v2035
        %v2324 = vpack.c.b16 %v2045, %v2036
        %v2325 = vpack.c.b16 %v2046, %v2037
        %v2326 = vpack.c.b16 %v2047, %v2038
        %v2327 = vpack.c.b16 %v2057, %v2048
        %v2328 = vpack.c.b16 %v2058, %v2049
        %v2329 = vpack.c.b16 %v2059, %v2050
        %v2330 = vpack.c.b16 %v2060, %v2051
        %v2331 = vpack.c.b16 %v2061, %v2052
        %v2332 = vpack.c.b16 %v2062, %v2053
        %v2333 = vpack.c.b16 %v2063, %v2054
        %v2334 = vpack.c.b16 %v2064, %v2055
        %v2335 = vpack.c.b16 %v2065, %v2056
        %v2336 = vpack.c.b16 %v2075, %v2066
        %v2337 = vpack.c.b16 %v2076, %v2067
        %v2338 = vpack.c.b16 %v2077, %v2068
        %v2339 = vpack.c.b16 %v2078, %v2069
        %v2340 = vpack.c.b16 %v2079, %v2070
        %v2341 = vpack.c.b16 %v2080, %v2071
        %v2342 = vpack.c.b16 %v2081, %v2072
        %v2343 = vpack.c.b16 %v2082, %v2073
        %v2344 = vpack.c.b16 %v2083, %v2074
        %v2345 = vpack.c.b16 %v2093, %v2084
        %v2346 = vpack.c.b16 %v2094, %v2085
        %v2347 = vpack.c.b16 %v2095, %v2086
        %v2348 = vpack.c.b16 %v2096, %v2087
        %v2349 = vpack.c.b16 %v2097, %v2088
        %v2350 = vpack.c.b16 %v2098, %v2089
        %v2351 = vpack.c.b16 %v2099, %v2090
        %v2352 = vpack.c.b16 %v2100, %v2091
        %v2353 = vpack.c.b16 %v2101, %v2092
        %v2354 = vpack.c.b16 %v2111, %v2102
        %v2355 = vpack.c.b16 %v2112, %v2103
        %v2356 = vpack.c.b16 %v2113, %v2104
        %v2357 = vpack.c.b16 %v2114, %v2105
        %v2358 = vpack.c.b16 %v2115, %v2106
        %v2359 = vpack.c.b16 %v2116, %v2107
        %v2360 = vpack.c.b16 %v2117, %v2108
        %v2361 = vpack.c.b16 %v2118, %v2109
        %v2362 = vpack.c.b16 %v2119, %v2110
        %v2363 = vpack.c.b16 %v2129, %v2120
        %v2364 = vpack.c.b16 %v2130, %v2121
        %v2365 = vpack.c.b16 %v2131, %v2122
        %v2366 = vpack.c.b16 %v2132, %v2123
        %v2367 = vpack.c.b16 %v2133, %v2124
        %v2368 = vpack.c.b16 %v2134, %v2125
        %v2369 = vpack.c.b16 %v2135, %v2126
        %v2370 = vpack.c.b16 %v2136, %v2127
        %v2371 = vpack.c.b16 %v2137, %v2128
        %v2372 = vpack.c.b16 %v2147, %v2138
        %v2373 = vpack.c.b16 %v2148, %v2139
        %v2374 = vpack.c.b16 %v2149, %v2140
        %v2375 = vpack.c.b16 %v2150, %v2141
        %v2376 = vpack.c.b16 %v2151, %v2142
        %v2377 = vpack.c.b16 %v2152, %v2143
        %v2378 = vpack.c.b16 %v2153, %v2144
        %v2379 = vpack.c.b16 %v2154, %v2145
        %v2380 = vpack.c.b16 %v2155, %v2146
        %v2607 = vsel %vm969, %v1156, 0
        %2609 = vmatprep.subr.bf16.mxu0 %v2220
        %2610 = vmatpush1.bf16.msra.mxu0 %v2219
        %2611 = vmatprep.subr.bf16.mxu0 %v2211
        %2612 = vmatpush1.bf16.msra.mxu0 %v2210
        %2613 = vmatprep.subr.bf16.mxu0 %v2202
        %2614 = vmatpush1.bf16.msra.mxu0 %v2201
        %2615 = vmatprep.subr.bf16.mxu0 %v2193
        %2616 = vmatpush1.bf16.msra.mxu0 %v2192
        %2617 = vmatprep.subr.bf16.mxu0 %v2184
        %2618 = vmatpush1.bf16.msra.mxu0 %v2183
        %2619 = vmatprep.subr.bf16.mxu0 %v2175
        %2620 = vmatpush1.bf16.msra.mxu0 %v2174
        %2621 = vmatprep.subr.bf16.mxu0 %v2166
        %2622 = vmatpush1.bf16.msra.mxu0 %v2165
        %2623 = vmatprep.subr.bf16.mxu0 %v2157
        %2624 = vmatpush1.bf16.msra.mxu0 %v2156
        %2625 = vmatprep.subr.bf16.mxu0 %v2292
        %2626 = vmatpush2.bf16.msra.mxu0 %v2291
        %2627 = vmatprep.subr.bf16.mxu0 %v2283
        %2628 = vmatpush2.bf16.msra.mxu0 %v2282
        %2629 = vmatprep.subr.bf16.mxu0 %v2274
        %2630 = vmatpush2.bf16.msra.mxu0 %v2273
        %2631 = vmatprep.subr.bf16.mxu0 %v2265
        %2632 = vmatpush2.bf16.msra.mxu0 %v2264
        %2633 = vmatprep.subr.bf16.mxu0 %v2256
        %2634 = vmatpush2.bf16.msra.mxu0 %v2255
        %2635 = vmatprep.subr.bf16.mxu0 %v2247
        %2636 = vmatpush2.bf16.msra.mxu0 %v2246
        %2637 = vmatprep.subr.bf16.mxu0 %v2238
        %2638 = vmatpush2.bf16.msra.mxu0 %v2237
        %2639 = vmatprep.subr.bf16.mxu0 %v2229
        %2640 = vmatpush2.bf16.msra.mxu0 %v2228
        %2641 = vmatprep.mubr.bf16.mxu0 %v1154
        %2642 = vmatmul.mubr.bf16.gmra.mxu0 %v1153
        %v2643 = vpop.f32.mrf.mxu0
        %v2644 = vadd.f32 %v1414, %v2643
        %v2645 = vpop.f32.mrf.mxu0
        %v2646 = vadd.f32 %v1418, %v2645
        %v2647 = vpop.f32.mrf.mxu0
        %v2648 = vadd.f32 %v1414, %v2647
        %v2649 = vpop.f32.mrf.mxu0
        %v2650 = vadd.f32 %v1418, %v2649
        %2651 = vdwg.mxu0
        %2652 = vmatprep.subr.bf16.mxu0 %v2364
        %2653 = vmatpush1.bf16.msra.mxu0 %v2363
        %2654 = vmatprep.subr.bf16.mxu0 %v2355
        %2655 = vmatpush1.bf16.msra.mxu0 %v2354
        %2656 = vmatprep.subr.bf16.mxu0 %v2346
        %2657 = vmatpush1.bf16.msra.mxu0 %v2345
        %2658 = vmatprep.subr.bf16.mxu0 %v2337
        %2659 = vmatpush1.bf16.msra.mxu0 %v2336
        %2660 = vmatprep.subr.bf16.mxu0 %v2328
        %2661 = vmatpush1.bf16.msra.mxu0 %v2327
        %2662 = vmatprep.subr.bf16.mxu0 %v2319
        %2663 = vmatpush1.bf16.msra.mxu0 %v2318
        %2664 = vmatprep.subr.bf16.mxu0 %v2310
        %2665 = vmatpush1.bf16.msra.mxu0 %v2309
        %2666 = vmatprep.subr.bf16.mxu0 %v2301
        %2667 = vmatpush1.bf16.msra.mxu0 %v2300
        %2668 = vmatprep.subr.bf16.mxu0 0
        %2669 = vmatpush2.bf16.msra.mxu0 0
        %2670 = vmatprep.subr.bf16.mxu0 0
        %2671 = vmatpush2.bf16.msra.mxu0 0
        %2672 = vmatprep.subr.bf16.mxu0 0
        %2673 = vmatpush2.bf16.msra.mxu0 0
        %2674 = vmatprep.subr.bf16.mxu0 0
        %2675 = vmatpush2.bf16.msra.mxu0 0
        %2676 = vmatprep.subr.bf16.mxu0 0
        %2677 = vmatpush2.bf16.msra.mxu0 0
        %2678 = vmatprep.subr.bf16.mxu0 0
        %2679 = vmatpush2.bf16.msra.mxu0 0
        %2680 = vmatprep.subr.bf16.mxu0 0
        %2681 = vmatpush2.bf16.msra.mxu0 0
        %2682 = vmatprep.subr.bf16.mxu0 %v2373
        %2683 = vmatpush2.bf16.msra.mxu0 %v2372
        %2684 = vmatprep.mubr.bf16.mxu0 %v2607
        %2685 = vmatmul.mubr.bf16.gmra.mxu0 %v1155
        %v2686 = vpop.f32.mrf.mxu0
        %v2687 = vadd.f32 %v2644, %v2686
        %v2688 = vpop.f32.mrf.mxu0
        %v2689 = vadd.f32 %v2646, %v2688
        %v2690 = vpop.f32.mrf.mxu0
        %v2691 = vadd.f32 %v2648, %v2690
        %v2692 = vpop.f32.mrf.mxu0
        %v2693 = vadd.f32 %v2650, %v2692
        %2694 = vdwg.mxu0
        %2695 = vmatprep.subr.bf16.mxu0 %v2222
        %2696 = vmatpush1.bf16.msra.mxu0 %v2221
        %2697 = vmatprep.subr.bf16.mxu0 %v2213
        %2698 = vmatpush1.bf16.msra.mxu0 %v2212
        %2699 = vmatprep.subr.bf16.mxu0 %v2204
        %2700 = vmatpush1.bf16.msra.mxu0 %v2203
        %2701 = vmatprep.subr.bf16.mxu0 %v2195
        %2702 = vmatpush1.bf16.msra.mxu0 %v2194
        %2703 = vmatprep.subr.bf16.mxu0 %v2186
        %2704 = vmatpush1.bf16.msra.mxu0 %v2185
        %2705 = vmatprep.subr.bf16.mxu0 %v2177
        %2706 = vmatpush1.bf16.msra.mxu0 %v2176
        %2707 = vmatprep.subr.bf16.mxu0 %v2168
        %2708 = vmatpush1.bf16.msra.mxu0 %v2167
        %2709 = vmatprep.subr.bf16.mxu0 %v2159
        %2710 = vmatpush1.bf16.msra.mxu0 %v2158
        %2711 = vmatprep.subr.bf16.mxu0 %v2294
        %2712 = vmatpush2.bf16.msra.mxu0 %v2293
        %2713 = vmatprep.subr.bf16.mxu0 %v2285
        %2714 = vmatpush2.bf16.msra.mxu0 %v2284
        %2715 = vmatprep.subr.bf16.mxu0 %v2276
        %2716 = vmatpush2.bf16.msra.mxu0 %v2275
        %2717 = vmatprep.subr.bf16.mxu0 %v2267
        %2718 = vmatpush2.bf16.msra.mxu0 %v2266
        %2719 = vmatprep.subr.bf16.mxu0 %v2258
        %2720 = vmatpush2.bf16.msra.mxu0 %v2257
        %2721 = vmatprep.subr.bf16.mxu0 %v2249
        %2722 = vmatpush2.bf16.msra.mxu0 %v2248
        %2723 = vmatprep.subr.bf16.mxu0 %v2240
        %2724 = vmatpush2.bf16.msra.mxu0 %v2239
        %2725 = vmatprep.subr.bf16.mxu0 %v2231
        %2726 = vmatpush2.bf16.msra.mxu0 %v2230
        %2727 = vmatprep.mubr.bf16.mxu0 %v1154
        %2728 = vmatmul.mubr.bf16.gmra.mxu0 %v1153
        %v2729 = vpop.f32.mrf.mxu0
        %v2730 = vadd.f32 %v1422, %v2729
        %v2731 = vpop.f32.mrf.mxu0
        %v2732 = vadd.f32 %v1426, %v2731
        %v2733 = vpop.f32.mrf.mxu0
        %v2734 = vadd.f32 %v1422, %v2733
        %v2735 = vpop.f32.mrf.mxu0
        %v2736 = vadd.f32 %v1426, %v2735
        %2737 = vdwg.mxu0
        %2738 = vmatprep.subr.bf16.mxu0 %v2366
        %2739 = vmatpush1.bf16.msra.mxu0 %v2365
        %2740 = vmatprep.subr.bf16.mxu0 %v2357
        %2741 = vmatpush1.bf16.msra.mxu0 %v2356
        %2742 = vmatprep.subr.bf16.mxu0 %v2348
        %2743 = vmatpush1.bf16.msra.mxu0 %v2347
        %2744 = vmatprep.subr.bf16.mxu0 %v2339
        %2745 = vmatpush1.bf16.msra.mxu0 %v2338
        %2746 = vmatprep.subr.bf16.mxu0 %v2330
        %2747 = vmatpush1.bf16.msra.mxu0 %v2329
        %2748 = vmatprep.subr.bf16.mxu0 %v2321
        %2749 = vmatpush1.bf16.msra.mxu0 %v2320
        %2750 = vmatprep.subr.bf16.mxu0 %v2312
        %2751 = vmatpush1.bf16.msra.mxu0 %v2311
        %2752 = vmatprep.subr.bf16.mxu0 %v2303
        %2753 = vmatpush1.bf16.msra.mxu0 %v2302
        %2754 = vmatprep.subr.bf16.mxu0 0
        %2755 = vmatpush2.bf16.msra.mxu0 0
        %2756 = vmatprep.subr.bf16.mxu0 0
        %2757 = vmatpush2.bf16.msra.mxu0 0
        %2758 = vmatprep.subr.bf16.mxu0 0
        %2759 = vmatpush2.bf16.msra.mxu0 0
        %2760 = vmatprep.subr.bf16.mxu0 0
        %2761 = vmatpush2.bf16.msra.mxu0 0
        %2762 = vmatprep.subr.bf16.mxu0 0
        %2763 = vmatpush2.bf16.msra.mxu0 0
        %2764 = vmatprep.subr.bf16.mxu0 0
        %2765 = vmatpush2.bf16.msra.mxu0 0
        %2766 = vmatprep.subr.bf16.mxu0 0
        %2767 = vmatpush2.bf16.msra.mxu0 0
        %2768 = vmatprep.subr.bf16.mxu0 %v2375
        %2769 = vmatpush2.bf16.msra.mxu0 %v2374
        %2770 = vmatprep.mubr.bf16.mxu0 %v2607
        %2771 = vmatmul.mubr.bf16.gmra.mxu0 %v1155
        %v2772 = vpop.f32.mrf.mxu0
        %v2773 = vadd.f32 %v2730, %v2772
        %v2774 = vpop.f32.mrf.mxu0
        %v2775 = vadd.f32 %v2732, %v2774
        %v2776 = vpop.f32.mrf.mxu0
        %v2777 = vadd.f32 %v2734, %v2776
        %v2778 = vpop.f32.mrf.mxu0
        %v2779 = vadd.f32 %v2736, %v2778
        %2780 = vdwg.mxu0
        %2781 = vmatprep.subr.bf16.mxu0 %v2224
        %2782 = vmatpush1.bf16.msra.mxu0 %v2223
        %2783 = vmatprep.subr.bf16.mxu0 %v2215
        %2784 = vmatpush1.bf16.msra.mxu0 %v2214
        %2785 = vmatprep.subr.bf16.mxu0 %v2206
        %2786 = vmatpush1.bf16.msra.mxu0 %v2205
        %2787 = vmatprep.subr.bf16.mxu0 %v2197
        %2788 = vmatpush1.bf16.msra.mxu0 %v2196
        %2789 = vmatprep.subr.bf16.mxu0 %v2188
        %2790 = vmatpush1.bf16.msra.mxu0 %v2187
        %2791 = vmatprep.subr.bf16.mxu0 %v2179
        %2792 = vmatpush1.bf16.msra.mxu0 %v2178
        %2793 = vmatprep.subr.bf16.mxu0 %v2170
        %2794 = vmatpush1.bf16.msra.mxu0 %v2169
        %2795 = vmatprep.subr.bf16.mxu0 %v2161
        %2796 = vmatpush1.bf16.msra.mxu0 %v2160
        %2797 = vmatprep.subr.bf16.mxu0 %v2296
        %2798 = vmatpush2.bf16.msra.mxu0 %v2295
        %2799 = vmatprep.subr.bf16.mxu0 %v2287
        %2800 = vmatpush2.bf16.msra.mxu0 %v2286
        %2801 = vmatprep.subr.bf16.mxu0 %v2278
        %2802 = vmatpush2.bf16.msra.mxu0 %v2277
        %2803 = vmatprep.subr.bf16.mxu0 %v2269
        %2804 = vmatpush2.bf16.msra.mxu0 %v2268
        %2805 = vmatprep.subr.bf16.mxu0 %v2260
        %2806 = vmatpush2.bf16.msra.mxu0 %v2259
        %2807 = vmatprep.subr.bf16.mxu0 %v2251
        %2808 = vmatpush2.bf16.msra.mxu0 %v2250
        %2809 = vmatprep.subr.bf16.mxu0 %v2242
        %2810 = vmatpush2.bf16.msra.mxu0 %v2241
        %2811 = vmatprep.subr.bf16.mxu0 %v2233
        %2812 = vmatpush2.bf16.msra.mxu0 %v2232
        %2813 = vmatprep.mubr.bf16.mxu0 %v1154
        %2814 = vmatmul.mubr.bf16.gmra.mxu0 %v1153
        %v2815 = vpop.f32.mrf.mxu0
        %v2816 = vadd.f32 %v1430, %v2815
        %v2817 = vpop.f32.mrf.mxu0
        %v2818 = vadd.f32 %v1434, %v2817
        %v2819 = vpop.f32.mrf.mxu0
        %v2820 = vadd.f32 %v1430, %v2819
        %v2821 = vpop.f32.mrf.mxu0
        %v2822 = vadd.f32 %v1434, %v2821
        %2823 = vdwg.mxu0
        %2824 = vmatprep.subr.bf16.mxu0 %v2368
        %2825 = vmatpush1.bf16.msra.mxu0 %v2367
        %2826 = vmatprep.subr.bf16.mxu0 %v2359
        %2827 = vmatpush1.bf16.msra.mxu0 %v2358
        %2828 = vmatprep.subr.bf16.mxu0 %v2350
        %2829 = vmatpush1.bf16.msra.mxu0 %v2349
        %2830 = vmatprep.subr.bf16.mxu0 %v2341
        %2831 = vmatpush1.bf16.msra.mxu0 %v2340
        %2832 = vmatprep.subr.bf16.mxu0 %v2332
        %2833 = vmatpush1.bf16.msra.mxu0 %v2331
        %2834 = vmatprep.subr.bf16.mxu0 %v2323
        %2835 = vmatpush1.bf16.msra.mxu0 %v2322
        %2836 = vmatprep.subr.bf16.mxu0 %v2314
        %2837 = vmatpush1.bf16.msra.mxu0 %v2313
        %2838 = vmatprep.subr.bf16.mxu0 %v2305
        %2839 = vmatpush1.bf16.msra.mxu0 %v2304
        %2840 = vmatprep.subr.bf16.mxu0 0
        %2841 = vmatpush2.bf16.msra.mxu0 0
        %2842 = vmatprep.subr.bf16.mxu0 0
        %2843 = vmatpush2.bf16.msra.mxu0 0
        %2844 = vmatprep.subr.bf16.mxu0 0
        %2845 = vmatpush2.bf16.msra.mxu0 0
        %2846 = vmatprep.subr.bf16.mxu0 0
        %2847 = vmatpush2.bf16.msra.mxu0 0
        %2848 = vmatprep.subr.bf16.mxu0 0
        %2849 = vmatpush2.bf16.msra.mxu0 0
        %2850 = vmatprep.subr.bf16.mxu0 0
        %2851 = vmatpush2.bf16.msra.mxu0 0
        %2852 = vmatprep.subr.bf16.mxu0 0
        %2853 = vmatpush2.bf16.msra.mxu0 0
        %2854 = vmatprep.subr.bf16.mxu0 %v2377
        %2855 = vmatpush2.bf16.msra.mxu0 %v2376
        %2856 = vmatprep.mubr.bf16.mxu0 %v2607
        %2857 = vmatmul.mubr.bf16.gmra.mxu0 %v1155
        %v2858 = vpop.f32.mrf.mxu0
        %v2859 = vadd.f32 %v2816, %v2858
        %v2860 = vpop.f32.mrf.mxu0
        %v2861 = vadd.f32 %v2818, %v2860
        %v2862 = vpop.f32.mrf.mxu0
        %v2863 = vadd.f32 %v2820, %v2862
        %v2864 = vpop.f32.mrf.mxu0
        %v2865 = vadd.f32 %v2822, %v2864
        %2866 = vdwg.mxu0
        %2867 = vmatprep.subr.bf16.mxu0 %v2226
        %2868 = vmatpush1.bf16.msra.mxu0 %v2225
        %2869 = vmatprep.subr.bf16.mxu0 %v2217
        %2870 = vmatpush1.bf16.msra.mxu0 %v2216
        %2871 = vmatprep.subr.bf16.mxu0 %v2208
        %2872 = vmatpush1.bf16.msra.mxu0 %v2207
        %2873 = vmatprep.subr.bf16.mxu0 %v2199
        %2874 = vmatpush1.bf16.msra.mxu0 %v2198
        %2875 = vmatprep.subr.bf16.mxu0 %v2190
        %2876 = vmatpush1.bf16.msra.mxu0 %v2189
        %2877 = vmatprep.subr.bf16.mxu0 %v2181
        %2878 = vmatpush1.bf16.msra.mxu0 %v2180
        %2879 = vmatprep.subr.bf16.mxu0 %v2172
        %2880 = vmatpush1.bf16.msra.mxu0 %v2171
        %2881 = vmatprep.subr.bf16.mxu0 %v2163
        %2882 = vmatpush1.bf16.msra.mxu0 %v2162
        %2883 = vmatprep.subr.bf16.mxu0 %v2298
        %2884 = vmatpush2.bf16.msra.mxu0 %v2297
        %2885 = vmatprep.subr.bf16.mxu0 %v2289
        %2886 = vmatpush2.bf16.msra.mxu0 %v2288
        %2887 = vmatprep.subr.bf16.mxu0 %v2280
        %2888 = vmatpush2.bf16.msra.mxu0 %v2279
        %2889 = vmatprep.subr.bf16.mxu0 %v2271
        %2890 = vmatpush2.bf16.msra.mxu0 %v2270
        %2891 = vmatprep.subr.bf16.mxu0 %v2262
        %2892 = vmatpush2.bf16.msra.mxu0 %v2261
        %2893 = vmatprep.subr.bf16.mxu0 %v2253
        %2894 = vmatpush2.bf16.msra.mxu0 %v2252
        %2895 = vmatprep.subr.bf16.mxu0 %v2244
        %2896 = vmatpush2.bf16.msra.mxu0 %v2243
        %2897 = vmatprep.subr.bf16.mxu0 %v2235
        %2898 = vmatpush2.bf16.msra.mxu0 %v2234
        %2899 = vmatprep.mubr.bf16.mxu0 %v1154
        %2900 = vmatmul.mubr.bf16.gmra.mxu0 %v1153
        %v2901 = vpop.f32.mrf.mxu0
        %v2902 = vadd.f32 %v1438, %v2901
        %v2903 = vpop.f32.mrf.mxu0
        %v2904 = vadd.f32 %v1442, %v2903
        %v2905 = vpop.f32.mrf.mxu0
        %v2906 = vadd.f32 %v1438, %v2905
        %v2907 = vpop.f32.mrf.mxu0
        %v2908 = vadd.f32 %v1442, %v2907
        %2909 = vdwg.mxu0
        %2910 = vmatprep.subr.bf16.mxu0 %v2370
        %2911 = vmatpush1.bf16.msra.mxu0 %v2369
        %2912 = vmatprep.subr.bf16.mxu0 %v2361
        %2913 = vmatpush1.bf16.msra.mxu0 %v2360
        %2914 = vmatprep.subr.bf16.mxu0 %v2352
        %2915 = vmatpush1.bf16.msra.mxu0 %v2351
        %2916 = vmatprep.subr.bf16.mxu0 %v2343
        %2917 = vmatpush1.bf16.msra.mxu0 %v2342
        %2918 = vmatprep.subr.bf16.mxu0 %v2334
        %2919 = vmatpush1.bf16.msra.mxu0 %v2333
        %2920 = vmatprep.subr.bf16.mxu0 %v2325
        %2921 = vmatpush1.bf16.msra.mxu0 %v2324
        %2922 = vmatprep.subr.bf16.mxu0 %v2316
        %2923 = vmatpush1.bf16.msra.mxu0 %v2315
        %2924 = vmatprep.subr.bf16.mxu0 %v2307
        %2925 = vmatpush1.bf16.msra.mxu0 %v2306
        %2926 = vmatprep.subr.bf16.mxu0 0
        %2927 = vmatpush2.bf16.msra.mxu0 0
        %2928 = vmatprep.subr.bf16.mxu0 0
        %2929 = vmatpush2.bf16.msra.mxu0 0
        %2930 = vmatprep.subr.bf16.mxu0 0
        %2931 = vmatpush2.bf16.msra.mxu0 0
        %2932 = vmatprep.subr.bf16.mxu0 0
        %2933 = vmatpush2.bf16.msra.mxu0 0
        %2934 = vmatprep.subr.bf16.mxu0 0
        %2935 = vmatpush2.bf16.msra.mxu0 0
        %2936 = vmatprep.subr.bf16.mxu0 0
        %2937 = vmatpush2.bf16.msra.mxu0 0
        %2938 = vmatprep.subr.bf16.mxu0 0
        %2939 = vmatpush2.bf16.msra.mxu0 0
        %2940 = vmatprep.subr.bf16.mxu0 %v2379
        %2941 = vmatpush2.bf16.msra.mxu0 %v2378
        %2942 = vmatprep.mubr.bf16.mxu0 %v2607
        %2943 = vmatmul.mubr.bf16.gmra.mxu0 %v1155
        %v2944 = vpop.f32.mrf.mxu0
        %v2945 = vadd.f32 %v2902, %v2944
        %v2946 = vpop.f32.mrf.mxu0
        %v2947 = vadd.f32 %v2904, %v2946
        %v2948 = vpop.f32.mrf.mxu0
        %v2949 = vadd.f32 %v2906, %v2948
        %v2950 = vpop.f32.mrf.mxu0
        %v2951 = vadd.f32 %v2908, %v2950
        %2952 = vdwg.mxu0
        %2953 = vmatprep.subr.bf16.mxu0 0
        %2954 = vmatpush1.bf16.msra.mxu0 %v2227
        %2955 = vmatprep.subr.bf16.mxu0 0
        %2956 = vmatpush1.bf16.msra.mxu0 %v2218
        %2957 = vmatprep.subr.bf16.mxu0 0
        %2958 = vmatpush1.bf16.msra.mxu0 %v2209
        %2959 = vmatprep.subr.bf16.mxu0 0
        %2960 = vmatpush1.bf16.msra.mxu0 %v2200
        %2961 = vmatprep.subr.bf16.mxu0 0
        %2962 = vmatpush1.bf16.msra.mxu0 %v2191
        %2963 = vmatprep.subr.bf16.mxu0 0
        %2964 = vmatpush1.bf16.msra.mxu0 %v2182
        %2965 = vmatprep.subr.bf16.mxu0 0
        %2966 = vmatpush1.bf16.msra.mxu0 %v2173
        %2967 = vmatprep.subr.bf16.mxu0 0
        %2968 = vmatpush1.bf16.msra.mxu0 %v2164
        %2969 = vmatprep.subr.bf16.mxu0 0
        %2970 = vmatpush2.bf16.msra.mxu0 %v2299
        %2971 = vmatprep.subr.bf16.mxu0 0
        %2972 = vmatpush2.bf16.msra.mxu0 %v2290
        %2973 = vmatprep.subr.bf16.mxu0 0
        %2974 = vmatpush2.bf16.msra.mxu0 %v2281
        %2975 = vmatprep.subr.bf16.mxu0 0
        %2976 = vmatpush2.bf16.msra.mxu0 %v2272
        %2977 = vmatprep.subr.bf16.mxu0 0
        %2978 = vmatpush2.bf16.msra.mxu0 %v2263
        %2979 = vmatprep.subr.bf16.mxu0 0
        %2980 = vmatpush2.bf16.msra.mxu0 %v2254
        %2981 = vmatprep.subr.bf16.mxu0 0
        %2982 = vmatpush2.bf16.msra.mxu0 %v2245
        %2983 = vmatprep.subr.bf16.mxu0 0
        %2984 = vmatpush2.bf16.msra.mxu0 %v2236
        %2985 = vmatprep.mubr.bf16.mxu0 %v1154
        %2986 = vmatmul.mubr.bf16.gmra.mxu0 %v1153
        %v2987 = vpop.f32.mrf.mxu0
        %v2988 = vadd.f32 %v1446, %v2987
        %v2989 = vpop.f32.mrf.mxu0
        %v2990 = vpop.f32.mrf.mxu0
        %v2991 = vadd.f32 %v1446, %v2990
        %v2992 = vpop.f32.mrf.mxu0
        %2993 = vdwg.mxu0
        %2994 = vmatprep.subr.bf16.mxu0 0
        %2995 = vmatpush1.bf16.msra.mxu0 %v2371
        %2996 = vmatprep.subr.bf16.mxu0 0
        %2997 = vmatpush1.bf16.msra.mxu0 %v2362
        %2998 = vmatprep.subr.bf16.mxu0 0
        %2999 = vmatpush1.bf16.msra.mxu0 %v2353
        %3000 = vmatprep.subr.bf16.mxu0 0
        %3001 = vmatpush1.bf16.msra.mxu0 %v2344
        %3002 = vmatprep.subr.bf16.mxu0 0
        %3003 = vmatpush1.bf16.msra.mxu0 %v2335
        %3004 = vmatprep.subr.bf16.mxu0 0
        %3005 = vmatpush1.bf16.msra.mxu0 %v2326
        %3006 = vmatprep.subr.bf16.mxu0 0
        %3007 = vmatpush1.bf16.msra.mxu0 %v2317
        %3008 = vmatprep.subr.bf16.mxu0 0
        %3009 = vmatpush1.bf16.msra.mxu0 %v2308
        %3010 = vmatprep.subr.bf16.mxu0 0
        %3011 = vmatpush2.bf16.msra.mxu0 0
        %3012 = vmatprep.subr.bf16.mxu0 0
        %3013 = vmatpush2.bf16.msra.mxu0 0
        %3014 = vmatprep.subr.bf16.mxu0 0
        %3015 = vmatpush2.bf16.msra.mxu0 0
        %3016 = vmatprep.subr.bf16.mxu0 0
        %3017 = vmatpush2.bf16.msra.mxu0 0
        %3018 = vmatprep.subr.bf16.mxu0 0
        %3019 = vmatpush2.bf16.msra.mxu0 0
        %3020 = vmatprep.subr.bf16.mxu0 0
        %3021 = vmatpush2.bf16.msra.mxu0 0
        %3022 = vmatprep.subr.bf16.mxu0 0
        %3023 = vmatpush2.bf16.msra.mxu0 0
        %3024 = vmatprep.subr.bf16.mxu0 0
        %3025 = vmatpush2.bf16.msra.mxu0 %v2380
        %3026 = vmatprep.mubr.bf16.mxu0 %v2607
        %3027 = vmatmul.mubr.bf16.gmra.mxu0 %v1155
        %v3028 = vpop.f32.mrf.mxu0
        %v3029 = vadd.f32 %v2988, %v3028
        %v3030 = vpop.f32.mrf.mxu0
        %v3031 = vpop.f32.mrf.mxu0
        %v3032 = vadd.f32 %v2991, %v3031
        %v3033 = vpop.f32.mrf.mxu0
        %3034 = vdwg.mxu0
        %v3035 = vtanh.pop %v2687
        %v3036 = vtanh.pop %v2689
        %v3037 = vtanh.pop %v2773
        %v3038 = vtanh.pop %v2775
        %v3039 = vtanh.pop %v2859
        %v3040 = vtanh.pop %v2861
        %v3041 = vtanh.pop %v2945
        %v3042 = vtanh.pop %v2947
        %v3043 = vtanh.pop %v3029
        %v3044 = vtanh.pop %v2691
        %v3045 = vtanh.pop %v2693
        %v3046 = vtanh.pop %v2777
        %v3047 = vtanh.pop %v2779
        %v3048 = vtanh.pop %v2863
        %v3049 = vtanh.pop %v2865
        %v3050 = vtanh.pop %v2949
        %v3051 = vtanh.pop %v2951
        %v3052 = vtanh.pop %v3032
        %3053 = vst [vmem:[%s319] sm:$0xff] %v3035
        %3054 = vst [vmem:[%s319 + $0x8] sm:$0xff] %v3036
        %3055 = vst [vmem:[%s319 + $0x10] sm:$0xff] %v3037
        %3056 = vst [vmem:[%s319 + $0x18] sm:$0xff] %v3038
        %3057 = vst [vmem:[%s319 + $0x20] sm:$0xff] %v3039
        %3058 = vst [vmem:[%s319 + $0x28] sm:$0xff] %v3040
        %3059 = vst [vmem:[%s319 + $0x30] sm:$0xff] %v3041
        %3060 = vst [vmem:[%s319 + $0x38] sm:$0xff] %v3042
        %3061 = vst [vmem:[%s319 + $0x40] sm:$0xff] %v3043
        %3062 = vst [vmem:[%s319 + $0x48] sm:$0xff] %v3044
        %3063 = vst [vmem:[%s319 + $0x50] sm:$0xff] %v3045
        %3064 = vst [vmem:[%s319 + $0x58] sm:$0xff] %v3046
        %3065 = vst [vmem:[%s319 + $0x60] sm:$0xff] %v3047
        %3066 = vst [vmem:[%s319 + $0x68] sm:$0xff] %v3048
        %3067 = vst [vmem:[%s319 + $0x70] sm:$0xff] %v3049
        %3068 = vst [vmem:[%s319 + $0x78] sm:$0xff] %v3050
        %3069 = vst [vmem:[%s319 + $0x80] sm:$0xff] %v3051
        %3070 = vst [vmem:[%s319 + $0x88] sm:$0xff] %v3052
        %s3071 = sand.u32 %s147, 1
        %s3072 = scalar_lea.sflag [#allocation4], %s3071
        %s3073 = sand.u32 %s147, 1
        %s3074 = smul.addr %s3073, 144
        %s3075 = scalar_lea.vmem [#allocation11], %s3074
        // Predicated region
        $region61: #{tpu_custom_call.1} parent=39 // pred_check
          %p3076 = pneg %p157
        $region62: #{tpu_custom_call.1} parent=39 // pred_check_branch
          %3078 = sbr.rel (%p3076) target = $region64
        $region63: #{tpu_custom_call.1} parent=39 // pred_region
          %s3079 = smul.u32 9, %s24
          %s3081 = ssub.s32 2304, 2304
          %3082 = vsyncadd %s3072, %s3081
          %s3083 = smul.addr %s3079, 128
          %s3084 = scalar_lea.hbm %s5, %s3083
          %s3085 = sshll.u32 %s3075, 4
          %s3086 = int_to_ptr.vmem [resolvable:$true] %s3085
          %3091 = dma.vmem_to_hbm [thread:$0]  %s3086, 2304, %s3084, %s3072, 1152, 4608, 72
        $region64: #{tpu_custom_call.1} parent=39 // pred_fallthru
          _
      $region40: #{tpu_custom_call.1} parent=5 // pred_fallthru
        _
      %p3092 = scmp.le.s32.totalorder 2, %s19
      // Predicated region
      $region65: #{tpu_custom_call.1} parent=5 // pred_check
        %p3093 = pneg %p3092
      $region66: #{tpu_custom_call.1} parent=5 // pred_check_branch
        %3095 = sbr.rel (%p3093) target = $region68
      $region67: #{tpu_custom_call.1} parent=5 // pred_region
        %s3096 = ssub.s32 %s19, 2
        // Predicated region
        $region69: #{tpu_custom_call.1} parent=67 // pred_check
          %p3097 = pneg %p163
        $region70: #{tpu_custom_call.1} parent=67 // pred_check_branch
          %3099 = sbr.rel (%p3097) target = $region72
        $region71: #{tpu_custom_call.1} parent=67 // pred_region
          %s3100 = sand.u32 %s148, 1
          %s3101 = scalar_lea.sflag [#allocation4], %s3100
          %s3102 = sand.u32 %s148, 1
          %s3103 = smul.addr %s3102, 144
          %s3104 = scalar_lea.vmem [#allocation11], %s3103
          %3105 = dma.done %s3101, 2304
        $region72: #{tpu_custom_call.1} parent=67 // pred_fallthru
          _
      $region68: #{tpu_custom_call.1} parent=5 // pred_fallthru
        _
    $region6: #{tpu_custom_call.1} parent=1 // loop_footer
      %s23 = sadd.s32 1, %s19
    $region7: #{tpu_custom_call.1} parent=1 // loop_footer_branch
      %18 = sbr.rel target = $region3
    $region8: #{tpu_custom_call.1} parent=1 // loop_exit
      _
    %3106 = vsyncpa [#allocation3], 1
    %s3107 = scalar_lea.sflag [#allocation3], 1
    %3108 = vsyncpa %s3107, 1
    %3109 = vsyncpa [#allocation6], 1
    %3110 = vsyncpa [#allocation9], 1
    %s3111 = scalar_lea.sflag [#allocation9], 1
    %3112 = vsyncpa %s3111, 1
    %3113 = vsyncpa [#allocation4], 1
    %s3114 = scalar_lea.sflag [#allocation4], 1
    %3115 = vsyncpa %s3114, 1

</llo_original>
